<compile_context>
chip_gen: v7x
topology: tpu7x:2x2x1
jax: 0.10.0
libtpu: 0.0.40
codegen_flags: <defaults>
</compile_context>

<pallas_src>
import functools

import jax
import jax.numpy as jnp
from jax import lax
from jax.experimental import pallas as pl
from jax.experimental.pallas import tpu as pltpu


def _round4(x):
    # torch.round(x, decimals=4): round-half-to-even at 4 decimal places.
    return jnp.round(x * 1e4) * 1e-4


def mha_kernel(x_ref, w_ref, o_ref, *, batch, seq, num_heads, head_dim):
    """Single invocation: one wide projection matmul, then per-(batch, head) attention."""
    B, T, H, D = batch, seq, num_heads, head_dim
    HD = H * D

    x = x_ref[...]      # (B*T, E)
    w = w_ref[...]      # (E, 3*H*D) = [Q_0..Q_{H-1} | K_0..K_{H-1} | V_0..V_{H-1}],
                        # with 1/sqrt(D) already folded into the Q columns.

    # One wide MXU matmul for all batches' and heads' Q, K and V projections.
    qkv = jnp.dot(x, w, preferred_element_type=jnp.float32)    # (B*T, 3*H*D)

    # Causal mask (keep row >= col), computed once.
    row = lax.broadcasted_iota(jnp.int32, (T, T), 0)
    col = lax.broadcasted_iota(jnp.int32, (T, T), 1)
    causal = row >= col
    neg_inf = jnp.float32(-jnp.inf)

    batch_outs = []
    for b in range(B):                          # B is small & static: fully unrolled
        qkv_b = qkv[b * T:(b + 1) * T]          # (T, 3*HD), static sublane slice
        q_all = qkv_b[:, 0 * HD:1 * HD]         # (T, HD)  (scale pre-folded)
        k_all = qkv_b[:, 1 * HD:2 * HD]         # (T, HD)
        v_all = qkv_b[:, 2 * HD:3 * HD]         # (T, HD)

        head_outs = []
        for h in range(H):                      # H is small & static: fully unrolled
            q = q_all[:, h * D:(h + 1) * D]     # (T, D)
            k = k_all[:, h * D:(h + 1) * D]     # (T, D)
            v = v_all[:, h * D:(h + 1) * D]     # (T, D)

            # q @ k^T by contracting the last dims directly (no explicit k.T relayout).
            s = lax.dot_general(q, k, (((1,), (1,)), ((), ())),
                                preferred_element_type=jnp.float32)   # (T, T)
            s = jnp.where(causal, s, neg_inf)   # safe: diagonal is never masked

            m = jnp.max(s, axis=-1, keepdims=True)
            e = jnp.exp(s - m)
            l = jnp.sum(e, axis=-1, keepdims=True)

            # Unnormalized PV matmul; normalize afterwards (T reciprocals + T*D muls
            # instead of T*T divides; exact reciprocal kept for 4-decimal fidelity).
            o_h = jnp.dot(e, v, preferred_element_type=jnp.float32)   # (T, D)
            head_outs.append(o_h * (1.0 / l))

        batch_outs.append(jnp.concatenate(head_outs, axis=-1))        # (T, HD)

    out = jnp.concatenate(batch_outs, axis=0)                         # (B*T, HD)
    # Elementwise double round == torch's per-head round followed by post-concat round.
    o_ref[...] = _round4(_round4(out))          # ONE consolidated store


def fuse_qkv_weights(wq, wk, wv):
    """Precompute the fused (E, 3*H*D) projection matrix ONCE (hoisted out of the
    per-call path).  Column block h*D:(h+1)*D of each third corresponds to head h.
    1/sqrt(D) is folded into the Q columns so the kernel never scales."""
    H, E, D = wq.shape
    HD = H * D
    scale = 1.0 / (D ** 0.5)
    wq_f = jnp.transpose(wq * scale, (1, 0, 2)).reshape(E, HD)
    wk_f = jnp.transpose(wk, (1, 0, 2)).reshape(E, HD)
    wv_f = jnp.transpose(wv, (1, 0, 2)).reshape(E, HD)
    return jnp.concatenate([wq_f, wk_f, wv_f], axis=-1)               # (E, 3*HD)


def multi_head_attention(x, w_qkv, *, num_heads):
    """x: [B, T, E] f32; w_qkv: [E, 3*H*D] f32 (precomputed via fuse_qkv_weights).

    Returns [B, T, H*D] f32, matching MultiHeadAttention.forward.
    """
    B, T, E = x.shape
    HD = w_qkv.shape[1] // 3
    D = HD // num_heads

    x2d = x.reshape(B * T, E)   # contiguous reshape: free

    kernel = functools.partial(mha_kernel, batch=B, seq=T,
                               num_heads=num_heads, head_dim=D)

    out2d = pl.pallas_call(
        kernel,
        out_shape=jax.ShapeDtypeStruct((B * T, HD), jnp.float32),
        # No grid: single invocation, whole KB-scale operands resident in VMEM.
        # (Re-introduce a "parallel" batch grid axis only on v7x once B is large
        #  enough that each TensorCore gets > ~1 us of work.)
        in_specs=[
            pl.BlockSpec(memory_space=pltpu.MemorySpace.VMEM),   # x  (B*T, E)
            pl.BlockSpec(memory_space=pltpu.MemorySpace.VMEM),   # w  (E, 3*HD), resident
        ],
        out_specs=pl.BlockSpec(memory_space=pltpu.MemorySpace.VMEM),
        compiler_params=pltpu.CompilerParams(
            # Explicit budget so reuse at production E / H*D (esp. v7x's 64 MiB VMEM)
            # stays deliberate; today's operands are only a few KB.
            vmem_limit_bytes=16 * 1024 * 1024,
        ),
    )(x2d, w_qkv)

    return out2d.reshape(B, T, HD)


def init_params(embedding_dim, attention_dim, num_heads):
    """Deterministic init mirroring nn.Linear(E, D, bias=False) shapes.

    The PyTorch module calls torch.manual_seed(0) inside every
    SingleHeadAttention.__init__, so all heads get identical weights; we
    replicate that quirk by tiling one set of K/V/Q weights across heads.
    """
    D = attention_dim // num_heads
    bound = 1.0 / (embedding_dim ** 0.5)
    kk, kv, kq = jax.random.split(jax.random.PRNGKey(0), 3)
    # stored as [E, D] (i.e. weight.T) so the kernel computes x @ W
    wk1 = jax.random.uniform(kk, (embedding_dim, D), jnp.float32, -bound, bound)
    wv1 = jax.random.uniform(kv, (embedding_dim, D), jnp.float32, -bound, bound)
    wq1 = jax.random.uniform(kq, (embedding_dim, D), jnp.float32, -bound, bound)
    tile = lambda w: jnp.broadcast_to(w[None], (num_heads,) + w.shape).copy()
    return tile(wq1), tile(wk1), tile(wv1)


def reference(x, wq, wk, wv):
    """Pure-JAX mirror of the PyTorch forward (incl. both rounds) for checking."""
    H, E, D = wq.shape
    T = x.shape[1]
    outs = []
    mask = jnp.tril(jnp.ones((T, T), jnp.float32)) == 0
    for h in range(H):
        q = x @ wq[h]
        k = x @ wk[h]
        v = x @ wv[h]
        s = (q @ jnp.swapaxes(k, 1, 2)) / (D ** 0.5)
        s = jnp.where(mask[None], -jnp.inf, s)
        p = jax.nn.softmax(s, axis=2)
        outs.append(_round4(p @ v))
    return _round4(jnp.concatenate(outs, axis=2))


if __name__ == "__main__":
    # small shapes consistent with the module
    B, T = 2, 8
    embedding_dim = 32
    attention_dim = 16
    num_heads = 4

    key = jax.random.PRNGKey(0)
    x = jax.random.normal(key, (B, T, embedding_dim), jnp.float32)
    wq, wk, wv = init_params(embedding_dim, attention_dim, num_heads)

    # Hoisted: fuse (and scale-fold) the weights ONCE, outside the per-call path.
    w_qkv = jax.block_until_ready(fuse_qkv_weights(wq, wk, wv))

    out = multi_head_attention(x, w_qkv, num_heads=num_heads)
    jax.block_until_ready(out)

    ref = reference(x, wq, wk, wv)
    assert out.shape == (B, T, attention_dim), out.shape
    assert jnp.allclose(out, ref, atol=1e-4), float(jnp.max(jnp.abs(out - ref)))

    print("KERNEL_OK")
</pallas_src>

<mosaic_0001>
module attributes {stable_mosaic.version = 11 : i64} {
  func.func @mha_kernel(%arg0: memref<16x32xf32, #tpu.memory_space<vmem>>, %arg1: memref<32x48xf32, #tpu.memory_space<vmem>>, %arg2: memref<16x16xf32, #tpu.memory_space<vmem>>) attributes {dimension_semantics = [], scalar_prefetch = 0 : i64, scratch_operands = 0 : i64, tpu.core_type = #tpu.core_type<tc>} {
    %c0 = arith.constant 0 : index
    %c0_0 = arith.constant 0 : index
    %0 = vector.load %arg0[%c0, %c0_0] : memref<16x32xf32, #tpu.memory_space<vmem>>, vector<16x32xf32>
    %c0_1 = arith.constant 0 : index
    %c0_2 = arith.constant 0 : index
    %1 = vector.load %arg1[%c0_1, %c0_2] : memref<32x48xf32, #tpu.memory_space<vmem>>, vector<32x48xf32>
    %cst = arith.constant dense<0.000000e+00> : vector<16x48xf32>
    %2 = tpu.matmul %0, %1, %cst {dimension_numbers = #tpu.dot_dimension_numbers<[1], [0], [0], [1], [0, 0, 1, 1], [], []>} : vector<16x32xf32>, vector<32x48xf32>, vector<16x48xf32> -> vector<16x48xf32>
    %3 = tpu.iota {dimensions = array<i32: 0>} : vector<8x8xi32>
    %4 = tpu.iota {dimensions = array<i32: 1>} : vector<8x8xi32>
    %5 = arith.cmpi sge, %3, %4 : vector<8x8xi32>
    %6 = vector.extract_strided_slice %2 {offsets = [0, 0], sizes = [8, 48], strides = [1, 1]} : vector<16x48xf32> to vector<8x48xf32>
    %7 = vector.extract_strided_slice %6 {offsets = [0, 0], sizes = [8, 16], strides = [1, 1]} : vector<8x48xf32> to vector<8x16xf32>
    %8 = vector.extract_strided_slice %6 {offsets = [0, 16], sizes = [8, 16], strides = [1, 1]} : vector<8x48xf32> to vector<8x16xf32>
    %9 = vector.extract_strided_slice %6 {offsets = [0, 32], sizes = [8, 16], strides = [1, 1]} : vector<8x48xf32> to vector<8x16xf32>
    %10 = vector.extract_strided_slice %7 {offsets = [0, 0], sizes = [8, 4], strides = [1, 1]} : vector<8x16xf32> to vector<8x4xf32>
    %11 = vector.extract_strided_slice %8 {offsets = [0, 0], sizes = [8, 4], strides = [1, 1]} : vector<8x16xf32> to vector<8x4xf32>
    %12 = vector.extract_strided_slice %9 {offsets = [0, 0], sizes = [8, 4], strides = [1, 1]} : vector<8x16xf32> to vector<8x4xf32>
    %cst_3 = arith.constant dense<0.000000e+00> : vector<8x8xf32>
    %13 = tpu.matmul %10, %11, %cst_3 {dimension_numbers = #tpu.dot_dimension_numbers<[1], [1], [0], [0], [0, 0, 1, 0], [], []>} : vector<8x4xf32>, vector<8x4xf32>, vector<8x8xf32> -> vector<8x8xf32>
    %cst_4 = arith.constant 0xFF800000 : f32
    %14 = vector.broadcast %cst_4 : f32 to vector<8x8xf32>
    %15 = arith.select %5, %13, %14 : vector<8x8xi1>, vector<8x8xf32>
    %cst_5 = arith.constant dense<0xFF800000> : vector<8xf32>
    %16 = vector.multi_reduction <maximumf>, %15, %cst_5 [1] : vector<8x8xf32> to vector<8xf32>
    %17 = vector.shape_cast %16 : vector<8xf32> to vector<8x1xf32>
    %18 = vector.broadcast %17 : vector<8x1xf32> to vector<8x8xf32>
    %19 = arith.subf %15, %18 : vector<8x8xf32>
    %20 = math.exp %19 : vector<8x8xf32>
    %cst_6 = arith.constant dense<0.000000e+00> : vector<8xf32>
    %21 = vector.multi_reduction <add>, %20, %cst_6 [1] : vector<8x8xf32> to vector<8xf32>
    %22 = vector.shape_cast %21 : vector<8xf32> to vector<8x1xf32>
    %cst_7 = arith.constant dense<0.000000e+00> : vector<8x4xf32>
    %23 = tpu.matmul %20, %12, %cst_7 {dimension_numbers = #tpu.dot_dimension_numbers<[1], [0], [0], [1], [0, 0, 1, 1], [], []>} : vector<8x8xf32>, vector<8x4xf32>, vector<8x4xf32> -> vector<8x4xf32>
    %cst_8 = arith.constant 1.000000e+00 : f32
    %24 = vector.broadcast %cst_8 : f32 to vector<8x1xf32>
    %25 = arith.divf %24, %22 : vector<8x1xf32>
    %26 = vector.broadcast %25 : vector<8x1xf32> to vector<8x4xf32>
    %27 = arith.mulf %23, %26 : vector<8x4xf32>
    %28 = vector.extract_strided_slice %7 {offsets = [0, 4], sizes = [8, 4], strides = [1, 1]} : vector<8x16xf32> to vector<8x4xf32>
    %29 = vector.extract_strided_slice %8 {offsets = [0, 4], sizes = [8, 4], strides = [1, 1]} : vector<8x16xf32> to vector<8x4xf32>
    %30 = vector.extract_strided_slice %9 {offsets = [0, 4], sizes = [8, 4], strides = [1, 1]} : vector<8x16xf32> to vector<8x4xf32>
    %cst_9 = arith.constant dense<0.000000e+00> : vector<8x8xf32>
    %31 = tpu.matmul %28, %29, %cst_9 {dimension_numbers = #tpu.dot_dimension_numbers<[1], [1], [0], [0], [0, 0, 1, 0], [], []>} : vector<8x4xf32>, vector<8x4xf32>, vector<8x8xf32> -> vector<8x8xf32>
    %cst_10 = arith.constant 0xFF800000 : f32
    %32 = vector.broadcast %cst_10 : f32 to vector<8x8xf32>
    %33 = arith.select %5, %31, %32 : vector<8x8xi1>, vector<8x8xf32>
    %cst_11 = arith.constant dense<0xFF800000> : vector<8xf32>
    %34 = vector.multi_reduction <maximumf>, %33, %cst_11 [1] : vector<8x8xf32> to vector<8xf32>
    %35 = vector.shape_cast %34 : vector<8xf32> to vector<8x1xf32>
    %36 = vector.broadcast %35 : vector<8x1xf32> to vector<8x8xf32>
    %37 = arith.subf %33, %36 : vector<8x8xf32>
    %38 = math.exp %37 : vector<8x8xf32>
    %cst_12 = arith.constant dense<0.000000e+00> : vector<8xf32>
    %39 = vector.multi_reduction <add>, %38, %cst_12 [1] : vector<8x8xf32> to vector<8xf32>
    %40 = vector.shape_cast %39 : vector<8xf32> to vector<8x1xf32>
    %cst_13 = arith.constant dense<0.000000e+00> : vector<8x4xf32>
    %41 = tpu.matmul %38, %30, %cst_13 {dimension_numbers = #tpu.dot_dimension_numbers<[1], [0], [0], [1], [0, 0, 1, 1], [], []>} : vector<8x8xf32>, vector<8x4xf32>, vector<8x4xf32> -> vector<8x4xf32>
    %cst_14 = arith.constant 1.000000e+00 : f32
    %42 = vector.broadcast %cst_14 : f32 to vector<8x1xf32>
    %43 = arith.divf %42, %40 : vector<8x1xf32>
    %44 = vector.broadcast %43 : vector<8x1xf32> to vector<8x4xf32>
    %45 = arith.mulf %41, %44 : vector<8x4xf32>
    %46 = vector.extract_strided_slice %7 {offsets = [0, 8], sizes = [8, 4], strides = [1, 1]} : vector<8x16xf32> to vector<8x4xf32>
    %47 = vector.extract_strided_slice %8 {offsets = [0, 8], sizes = [8, 4], strides = [1, 1]} : vector<8x16xf32> to vector<8x4xf32>
    %48 = vector.extract_strided_slice %9 {offsets = [0, 8], sizes = [8, 4], strides = [1, 1]} : vector<8x16xf32> to vector<8x4xf32>
    %cst_15 = arith.constant dense<0.000000e+00> : vector<8x8xf32>
    %49 = tpu.matmul %46, %47, %cst_15 {dimension_numbers = #tpu.dot_dimension_numbers<[1], [1], [0], [0], [0, 0, 1, 0], [], []>} : vector<8x4xf32>, vector<8x4xf32>, vector<8x8xf32> -> vector<8x8xf32>
    %cst_16 = arith.constant 0xFF800000 : f32
    %50 = vector.broadcast %cst_16 : f32 to vector<8x8xf32>
    %51 = arith.select %5, %49, %50 : vector<8x8xi1>, vector<8x8xf32>
    %cst_17 = arith.constant dense<0xFF800000> : vector<8xf32>
    %52 = vector.multi_reduction <maximumf>, %51, %cst_17 [1] : vector<8x8xf32> to vector<8xf32>
    %53 = vector.shape_cast %52 : vector<8xf32> to vector<8x1xf32>
    %54 = vector.broadcast %53 : vector<8x1xf32> to vector<8x8xf32>
    %55 = arith.subf %51, %54 : vector<8x8xf32>
    %56 = math.exp %55 : vector<8x8xf32>
    %cst_18 = arith.constant dense<0.000000e+00> : vector<8xf32>
    %57 = vector.multi_reduction <add>, %56, %cst_18 [1] : vector<8x8xf32> to vector<8xf32>
    %58 = vector.shape_cast %57 : vector<8xf32> to vector<8x1xf32>
    %cst_19 = arith.constant dense<0.000000e+00> : vector<8x4xf32>
    %59 = tpu.matmul %56, %48, %cst_19 {dimension_numbers = #tpu.dot_dimension_numbers<[1], [0], [0], [1], [0, 0, 1, 1], [], []>} : vector<8x8xf32>, vector<8x4xf32>, vector<8x4xf32> -> vector<8x4xf32>
    %cst_20 = arith.constant 1.000000e+00 : f32
    %60 = vector.broadcast %cst_20 : f32 to vector<8x1xf32>
    %61 = arith.divf %60, %58 : vector<8x1xf32>
    %62 = vector.broadcast %61 : vector<8x1xf32> to vector<8x4xf32>
    %63 = arith.mulf %59, %62 : vector<8x4xf32>
    %64 = vector.extract_strided_slice %7 {offsets = [0, 12], sizes = [8, 4], strides = [1, 1]} : vector<8x16xf32> to vector<8x4xf32>
    %65 = vector.extract_strided_slice %8 {offsets = [0, 12], sizes = [8, 4], strides = [1, 1]} : vector<8x16xf32> to vector<8x4xf32>
    %66 = vector.extract_strided_slice %9 {offsets = [0, 12], sizes = [8, 4], strides = [1, 1]} : vector<8x16xf32> to vector<8x4xf32>
    %cst_21 = arith.constant dense<0.000000e+00> : vector<8x8xf32>
    %67 = tpu.matmul %64, %65, %cst_21 {dimension_numbers = #tpu.dot_dimension_numbers<[1], [1], [0], [0], [0, 0, 1, 0], [], []>} : vector<8x4xf32>, vector<8x4xf32>, vector<8x8xf32> -> vector<8x8xf32>
    %cst_22 = arith.constant 0xFF800000 : f32
    %68 = vector.broadcast %cst_22 : f32 to vector<8x8xf32>
    %69 = arith.select %5, %67, %68 : vector<8x8xi1>, vector<8x8xf32>
    %cst_23 = arith.constant dense<0xFF800000> : vector<8xf32>
    %70 = vector.multi_reduction <maximumf>, %69, %cst_23 [1] : vector<8x8xf32> to vector<8xf32>
    %71 = vector.shape_cast %70 : vector<8xf32> to vector<8x1xf32>
    %72 = vector.broadcast %71 : vector<8x1xf32> to vector<8x8xf32>
    %73 = arith.subf %69, %72 : vector<8x8xf32>
    %74 = math.exp %73 : vector<8x8xf32>
    %cst_24 = arith.constant dense<0.000000e+00> : vector<8xf32>
    %75 = vector.multi_reduction <add>, %74, %cst_24 [1] : vector<8x8xf32> to vector<8xf32>
    %76 = vector.shape_cast %75 : vector<8xf32> to vector<8x1xf32>
    %cst_25 = arith.constant dense<0.000000e+00> : vector<8x4xf32>
    %77 = tpu.matmul %74, %66, %cst_25 {dimension_numbers = #tpu.dot_dimension_numbers<[1], [0], [0], [1], [0, 0, 1, 1], [], []>} : vector<8x8xf32>, vector<8x4xf32>, vector<8x4xf32> -> vector<8x4xf32>
    %cst_26 = arith.constant 1.000000e+00 : f32
    %78 = vector.broadcast %cst_26 : f32 to vector<8x1xf32>
    %79 = arith.divf %78, %76 : vector<8x1xf32>
    %80 = vector.broadcast %79 : vector<8x1xf32> to vector<8x4xf32>
    %81 = arith.mulf %77, %80 : vector<8x4xf32>
    %82 = tpu.concatenate %27, %45, %63, %81 in 1 : vector<8x4xf32>, vector<8x4xf32>, vector<8x4xf32>, vector<8x4xf32> -> vector<8x16xf32>
    %83 = vector.extract_strided_slice %2 {offsets = [8, 0], sizes = [8, 48], strides = [1, 1]} : vector<16x48xf32> to vector<8x48xf32>
    %84 = vector.extract_strided_slice %83 {offsets = [0, 0], sizes = [8, 16], strides = [1, 1]} : vector<8x48xf32> to vector<8x16xf32>
    %85 = vector.extract_strided_slice %83 {offsets = [0, 16], sizes = [8, 16], strides = [1, 1]} : vector<8x48xf32> to vector<8x16xf32>
    %86 = vector.extract_strided_slice %83 {offsets = [0, 32], sizes = [8, 16], strides = [1, 1]} : vector<8x48xf32> to vector<8x16xf32>
    %87 = vector.extract_strided_slice %84 {offsets = [0, 0], sizes = [8, 4], strides = [1, 1]} : vector<8x16xf32> to vector<8x4xf32>
    %88 = vector.extract_strided_slice %85 {offsets = [0, 0], sizes = [8, 4], strides = [1, 1]} : vector<8x16xf32> to vector<8x4xf32>
    %89 = vector.extract_strided_slice %86 {offsets = [0, 0], sizes = [8, 4], strides = [1, 1]} : vector<8x16xf32> to vector<8x4xf32>
    %cst_27 = arith.constant dense<0.000000e+00> : vector<8x8xf32>
    %90 = tpu.matmul %87, %88, %cst_27 {dimension_numbers = #tpu.dot_dimension_numbers<[1], [1], [0], [0], [0, 0, 1, 0], [], []>} : vector<8x4xf32>, vector<8x4xf32>, vector<8x8xf32> -> vector<8x8xf32>
    %cst_28 = arith.constant 0xFF800000 : f32
    %91 = vector.broadcast %cst_28 : f32 to vector<8x8xf32>
    %92 = arith.select %5, %90, %91 : vector<8x8xi1>, vector<8x8xf32>
    %cst_29 = arith.constant dense<0xFF800000> : vector<8xf32>
    %93 = vector.multi_reduction <maximumf>, %92, %cst_29 [1] : vector<8x8xf32> to vector<8xf32>
    %94 = vector.shape_cast %93 : vector<8xf32> to vector<8x1xf32>
    %95 = vector.broadcast %94 : vector<8x1xf32> to vector<8x8xf32>
    %96 = arith.subf %92, %95 : vector<8x8xf32>
    %97 = math.exp %96 : vector<8x8xf32>
    %cst_30 = arith.constant dense<0.000000e+00> : vector<8xf32>
    %98 = vector.multi_reduction <add>, %97, %cst_30 [1] : vector<8x8xf32> to vector<8xf32>
    %99 = vector.shape_cast %98 : vector<8xf32> to vector<8x1xf32>
    %cst_31 = arith.constant dense<0.000000e+00> : vector<8x4xf32>
    %100 = tpu.matmul %97, %89, %cst_31 {dimension_numbers = #tpu.dot_dimension_numbers<[1], [0], [0], [1], [0, 0, 1, 1], [], []>} : vector<8x8xf32>, vector<8x4xf32>, vector<8x4xf32> -> vector<8x4xf32>
    %cst_32 = arith.constant 1.000000e+00 : f32
    %101 = vector.broadcast %cst_32 : f32 to vector<8x1xf32>
    %102 = arith.divf %101, %99 : vector<8x1xf32>
    %103 = vector.broadcast %102 : vector<8x1xf32> to vector<8x4xf32>
    %104 = arith.mulf %100, %103 : vector<8x4xf32>
    %105 = vector.extract_strided_slice %84 {offsets = [0, 4], sizes = [8, 4], strides = [1, 1]} : vector<8x16xf32> to vector<8x4xf32>
    %106 = vector.extract_strided_slice %85 {offsets = [0, 4], sizes = [8, 4], strides = [1, 1]} : vector<8x16xf32> to vector<8x4xf32>
    %107 = vector.extract_strided_slice %86 {offsets = [0, 4], sizes = [8, 4], strides = [1, 1]} : vector<8x16xf32> to vector<8x4xf32>
    %cst_33 = arith.constant dense<0.000000e+00> : vector<8x8xf32>
    %108 = tpu.matmul %105, %106, %cst_33 {dimension_numbers = #tpu.dot_dimension_numbers<[1], [1], [0], [0], [0, 0, 1, 0], [], []>} : vector<8x4xf32>, vector<8x4xf32>, vector<8x8xf32> -> vector<8x8xf32>
    %cst_34 = arith.constant 0xFF800000 : f32
    %109 = vector.broadcast %cst_34 : f32 to vector<8x8xf32>
    %110 = arith.select %5, %108, %109 : vector<8x8xi1>, vector<8x8xf32>
    %cst_35 = arith.constant dense<0xFF800000> : vector<8xf32>
    %111 = vector.multi_reduction <maximumf>, %110, %cst_35 [1] : vector<8x8xf32> to vector<8xf32>
    %112 = vector.shape_cast %111 : vector<8xf32> to vector<8x1xf32>
    %113 = vector.broadcast %112 : vector<8x1xf32> to vector<8x8xf32>
    %114 = arith.subf %110, %113 : vector<8x8xf32>
    %115 = math.exp %114 : vector<8x8xf32>
    %cst_36 = arith.constant dense<0.000000e+00> : vector<8xf32>
    %116 = vector.multi_reduction <add>, %115, %cst_36 [1] : vector<8x8xf32> to vector<8xf32>
    %117 = vector.shape_cast %116 : vector<8xf32> to vector<8x1xf32>
    %cst_37 = arith.constant dense<0.000000e+00> : vector<8x4xf32>
    %118 = tpu.matmul %115, %107, %cst_37 {dimension_numbers = #tpu.dot_dimension_numbers<[1], [0], [0], [1], [0, 0, 1, 1], [], []>} : vector<8x8xf32>, vector<8x4xf32>, vector<8x4xf32> -> vector<8x4xf32>
    %cst_38 = arith.constant 1.000000e+00 : f32
    %119 = vector.broadcast %cst_38 : f32 to vector<8x1xf32>
    %120 = arith.divf %119, %117 : vector<8x1xf32>
    %121 = vector.broadcast %120 : vector<8x1xf32> to vector<8x4xf32>
    %122 = arith.mulf %118, %121 : vector<8x4xf32>
    %123 = vector.extract_strided_slice %84 {offsets = [0, 8], sizes = [8, 4], strides = [1, 1]} : vector<8x16xf32> to vector<8x4xf32>
    %124 = vector.extract_strided_slice %85 {offsets = [0, 8], sizes = [8, 4], strides = [1, 1]} : vector<8x16xf32> to vector<8x4xf32>
    %125 = vector.extract_strided_slice %86 {offsets = [0, 8], sizes = [8, 4], strides = [1, 1]} : vector<8x16xf32> to vector<8x4xf32>
    %cst_39 = arith.constant dense<0.000000e+00> : vector<8x8xf32>
    %126 = tpu.matmul %123, %124, %cst_39 {dimension_numbers = #tpu.dot_dimension_numbers<[1], [1], [0], [0], [0, 0, 1, 0], [], []>} : vector<8x4xf32>, vector<8x4xf32>, vector<8x8xf32> -> vector<8x8xf32>
    %cst_40 = arith.constant 0xFF800000 : f32
    %127 = vector.broadcast %cst_40 : f32 to vector<8x8xf32>
    %128 = arith.select %5, %126, %127 : vector<8x8xi1>, vector<8x8xf32>
    %cst_41 = arith.constant dense<0xFF800000> : vector<8xf32>
    %129 = vector.multi_reduction <maximumf>, %128, %cst_41 [1] : vector<8x8xf32> to vector<8xf32>
    %130 = vector.shape_cast %129 : vector<8xf32> to vector<8x1xf32>
    %131 = vector.broadcast %130 : vector<8x1xf32> to vector<8x8xf32>
    %132 = arith.subf %128, %131 : vector<8x8xf32>
    %133 = math.exp %132 : vector<8x8xf32>
    %cst_42 = arith.constant dense<0.000000e+00> : vector<8xf32>
    %134 = vector.multi_reduction <add>, %133, %cst_42 [1] : vector<8x8xf32> to vector<8xf32>
    %135 = vector.shape_cast %134 : vector<8xf32> to vector<8x1xf32>
    %cst_43 = arith.constant dense<0.000000e+00> : vector<8x4xf32>
    %136 = tpu.matmul %133, %125, %cst_43 {dimension_numbers = #tpu.dot_dimension_numbers<[1], [0], [0], [1], [0, 0, 1, 1], [], []>} : vector<8x8xf32>, vector<8x4xf32>, vector<8x4xf32> -> vector<8x4xf32>
    %cst_44 = arith.constant 1.000000e+00 : f32
    %137 = vector.broadcast %cst_44 : f32 to vector<8x1xf32>
    %138 = arith.divf %137, %135 : vector<8x1xf32>
    %139 = vector.broadcast %138 : vector<8x1xf32> to vector<8x4xf32>
    %140 = arith.mulf %136, %139 : vector<8x4xf32>
    %141 = vector.extract_strided_slice %84 {offsets = [0, 12], sizes = [8, 4], strides = [1, 1]} : vector<8x16xf32> to vector<8x4xf32>
    %142 = vector.extract_strided_slice %85 {offsets = [0, 12], sizes = [8, 4], strides = [1, 1]} : vector<8x16xf32> to vector<8x4xf32>
    %143 = vector.extract_strided_slice %86 {offsets = [0, 12], sizes = [8, 4], strides = [1, 1]} : vector<8x16xf32> to vector<8x4xf32>
    %cst_45 = arith.constant dense<0.000000e+00> : vector<8x8xf32>
    %144 = tpu.matmul %141, %142, %cst_45 {dimension_numbers = #tpu.dot_dimension_numbers<[1], [1], [0], [0], [0, 0, 1, 0], [], []>} : vector<8x4xf32>, vector<8x4xf32>, vector<8x8xf32> -> vector<8x8xf32>
    %cst_46 = arith.constant 0xFF800000 : f32
    %145 = vector.broadcast %cst_46 : f32 to vector<8x8xf32>
    %146 = arith.select %5, %144, %145 : vector<8x8xi1>, vector<8x8xf32>
    %cst_47 = arith.constant dense<0xFF800000> : vector<8xf32>
    %147 = vector.multi_reduction <maximumf>, %146, %cst_47 [1] : vector<8x8xf32> to vector<8xf32>
    %148 = vector.shape_cast %147 : vector<8xf32> to vector<8x1xf32>
    %149 = vector.broadcast %148 : vector<8x1xf32> to vector<8x8xf32>
    %150 = arith.subf %146, %149 : vector<8x8xf32>
    %151 = math.exp %150 : vector<8x8xf32>
    %cst_48 = arith.constant dense<0.000000e+00> : vector<8xf32>
    %152 = vector.multi_reduction <add>, %151, %cst_48 [1] : vector<8x8xf32> to vector<8xf32>
    %153 = vector.shape_cast %152 : vector<8xf32> to vector<8x1xf32>
    %cst_49 = arith.constant dense<0.000000e+00> : vector<8x4xf32>
    %154 = tpu.matmul %151, %143, %cst_49 {dimension_numbers = #tpu.dot_dimension_numbers<[1], [0], [0], [1], [0, 0, 1, 1], [], []>} : vector<8x8xf32>, vector<8x4xf32>, vector<8x4xf32> -> vector<8x4xf32>
    %cst_50 = arith.constant 1.000000e+00 : f32
    %155 = vector.broadcast %cst_50 : f32 to vector<8x1xf32>
    %156 = arith.divf %155, %153 : vector<8x1xf32>
    %157 = vector.broadcast %156 : vector<8x1xf32> to vector<8x4xf32>
    %158 = arith.mulf %154, %157 : vector<8x4xf32>
    %159 = tpu.concatenate %104, %122, %140, %158 in 1 : vector<8x4xf32>, vector<8x4xf32>, vector<8x4xf32>, vector<8x4xf32> -> vector<8x16xf32>
    %160 = tpu.concatenate %82, %159 in 0 : vector<8x16xf32>, vector<8x16xf32> -> vector<16x16xf32>
    %cst_51 = arith.constant 1.000000e+04 : f32
    %161 = vector.broadcast %cst_51 : f32 to vector<16x16xf32>
    %162 = arith.mulf %160, %161 : vector<16x16xf32>
    %163 = math.roundeven %162 : vector<16x16xf32>
    %cst_52 = arith.constant 9.99999974E-5 : f32
    %164 = vector.broadcast %cst_52 : f32 to vector<16x16xf32>
    %165 = arith.mulf %163, %164 : vector<16x16xf32>
    %cst_53 = arith.constant 1.000000e+04 : f32
    %166 = vector.broadcast %cst_53 : f32 to vector<16x16xf32>
    %167 = arith.mulf %165, %166 : vector<16x16xf32>
    %168 = math.roundeven %167 : vector<16x16xf32>
    %cst_54 = arith.constant 9.99999974E-5 : f32
    %169 = vector.broadcast %cst_54 : f32 to vector<16x16xf32>
    %170 = arith.mulf %168, %169 : vector<16x16xf32>
    %c0_55 = arith.constant 0 : index
    %c0_56 = arith.constant 0 : index
    %171 = vector.load %arg2[%c0_55, %c0_56] : memref<16x16xf32, #tpu.memory_space<vmem>>, vector<16x16xf32>
    tpu.vector_store %arg2[%c0_55, %c0_56], %170 {strides = array<i32>} : memref<16x16xf32, #tpu.memory_space<vmem>>, vector<16x16xf32>,
    return
  }
}

</mosaic_0001>

<llo_original>
// kernel: tpu_custom_call.1
$region0: #{tpu_custom_call.1}
  #allocation0 [shape = 'u32[]', space=smem, size = 0x4, offset = 0x4, fixed_abs, tag = 'smem constant byte address 0x4 - core index']
  #allocation1 [shape = 'u32[144,128]{1,0:T(1,128)}', space=vmem, size = 0x12000, scoped, tag = 'internal scratch']
  %s0 = inlined_call_operand.hbm [shape: f32[16,32], index: 0, kind: input, shape index: {}]
  %s1 = inlined_call_operand.hbm [shape: f32[32,48], index: 1, kind: input, shape index: {}]
  %s2 = inlined_call_operand.hbm [shape: f32[16,16], index: 2, kind: output, shape index: {}]
  %s3 = sld [smem:[#allocation0]]
  $region26: #{tpu_custom_call.1} parent=0
    _
  %s5 = ssub.s32 1, %s3
  %s6 = scalar_select 0, %s5, %s3
  $region1: #{tpu_custom_call.1} parent=0
    #allocation2 [shape = 'u8[8192]{0}', space=vmem, size = 0x2000, scoped, tag = 'input window, operand 0, single buffered']
    #allocation3 [shape = 's32[1]{0}', space=sflag, size = 0x4, scoped, tag = 'scoped memory for tpu_custom_call.1']
    #allocation4 [shape = 's32[1]{0}', space=sflag, size = 0x4, scoped, tag = 'scoped memory for tpu_custom_call.1']
    #allocation5 [shape = 'u8[16384]{0}', space=vmem, size = 0x4000, scoped, tag = 'input window, operand 1, single buffered']
    #allocation6 [shape = 's32[1]{0}', space=sflag, size = 0x4, scoped, tag = 'scoped memory for tpu_custom_call.1']
    #allocation7 [shape = 'u8[8192]{0}', space=vmem, size = 0x2000, scoped, tag = 'output window, operand 0, single buffered']
    %7 = vsyncpa [#allocation3], 0
    %8 = vsyncpa [#allocation6], 0
    %9 = vsyncpa [#allocation4], 0
    // Predicated region
    $region2: #{tpu_custom_call.1} parent=1 // pred_check
      _
    $region3: #{tpu_custom_call.1} parent=1 // pred_check_branch
      %11 = sbr.rel (0) target = $region5
    $region4: #{tpu_custom_call.1} parent=1 // pred_region
      %s13 = ssub.s32 256, 256
      %14 = vsyncadd [#allocation3], %s13
      %s15 = sshll.u32 [#allocation2], 4
      %s16 = int_to_ptr.vmem [resolvable:$true] %s15
      %21 = dma.hbm_to_vmem [thread:$0]  %s0, 256, %s16, [#allocation3], 128, 128, 8
    $region5: #{tpu_custom_call.1} parent=1 // pred_fallthru
      _
    // Predicated region
    $region6: #{tpu_custom_call.1} parent=1 // pred_check
      _
    $region7: #{tpu_custom_call.1} parent=1 // pred_check_branch
      %23 = sbr.rel (0) target = $region9
    $region8: #{tpu_custom_call.1} parent=1 // pred_region
      %s25 = ssub.s32 512, 512
      %26 = vsyncadd [#allocation6], %s25
      %s27 = sshll.u32 [#allocation5], 4
      %s28 = int_to_ptr.vmem [resolvable:$true] %s27
      %33 = dma.hbm_to_vmem [thread:$0]  %s1, 512, %s28, [#allocation6], 128, 128, 8
    $region9: #{tpu_custom_call.1} parent=1 // pred_fallthru
      _
    // Predicated region
    $region10: #{tpu_custom_call.1} parent=1 // pred_check
      _
    $region11: #{tpu_custom_call.1} parent=1 // pred_check_branch
      %35 = sbr.rel (0) target = $region13
    $region12: #{tpu_custom_call.1} parent=1 // pred_region
      %36 = dma.done [#allocation3], 256
    $region13: #{tpu_custom_call.1} parent=1 // pred_fallthru
      _
    // Predicated region
    $region14: #{tpu_custom_call.1} parent=1 // pred_check
      _
    $region15: #{tpu_custom_call.1} parent=1 // pred_check_branch
      %38 = sbr.rel (0) target = $region17
    $region16: #{tpu_custom_call.1} parent=1 // pred_region
      %39 = dma.done [#allocation6], 512
    $region17: #{tpu_custom_call.1} parent=1 // pred_fallthru
      _
    %v40 = vld [vmem:[#allocation2] sm:$0xff]
    %v41 = vld [vmem:[#allocation2 + $0x8] sm:$0xff]
    %v42 = vld [vmem:[#allocation5] sm:$0xff]
    %v43 = vld [vmem:[#allocation5 + $0x8] sm:$0xff]
    %v44 = vld [vmem:[#allocation5 + $0x10] sm:$0xff]
    %v45 = vld [vmem:[#allocation5 + $0x18] sm:$0xff]
    %vm46 = vcmask 261120
    %v48 = vsel %vm46, %v40, 0
    %v51 = vsel %vm46, %v41, 0
    %53 = vmatprep.subr.mxu0 0.0
    %54 = vmatpush1.msra.mxu0 %v42
    %55 = vmatprep.subr.mxu0 0.0
    %56 = vmatpush1.msra.mxu0 %v43
    %57 = vmatprep.subr.mxu0 0.0
    %58 = vmatpush1.msra.mxu0 %v44
    %59 = vmatprep.subr.mxu0 0.0
    %60 = vmatpush1.msra.mxu0 %v45
    %61 = vmatprep.subr.mxu0 0.0
    %62 = vmatpush1.msra.mxu0 0.0
    %63 = vmatprep.subr.mxu0 0.0
    %64 = vmatpush1.msra.mxu0 0.0
    %65 = vmatprep.subr.mxu0 0.0
    %66 = vmatpush1.msra.mxu0 0.0
    %67 = vmatprep.subr.mxu0 0.0
    %68 = vmatpush1.msra.mxu0 0.0
    %69 = vmatprep.subr.mxu0 0.0
    %70 = vmatpush1.msra.mxu0 0.0
    %71 = vmatprep.subr.mxu0 0.0
    %72 = vmatpush1.msra.mxu0 0.0
    %73 = vmatprep.subr.mxu0 0.0
    %74 = vmatpush1.msra.mxu0 0.0
    %75 = vmatprep.subr.mxu0 0.0
    %76 = vmatpush1.msra.mxu0 0.0
    %77 = vmatprep.subr.mxu0 0.0
    %78 = vmatpush1.msra.mxu0 0.0
    %79 = vmatprep.subr.mxu0 0.0
    %80 = vmatpush1.msra.mxu0 0.0
    %81 = vmatprep.subr.mxu0 0.0
    %82 = vmatpush1.msra.mxu0 0.0
    %83 = vmatprep.subr.mxu0 0.0
    %84 = vmatpush1.msra.mxu0 0.0
    %85 = vmatprep.subr.mxu0 0.0
    %86 = vmatpush1.msra.mxu0 0.0
    %87 = vmatprep.subr.mxu0 0.0
    %88 = vmatpush1.msra.mxu0 0.0
    %89 = vmatprep.subr.mxu0 0.0
    %90 = vmatpush1.msra.mxu0 0.0
    %91 = vmatprep.subr.mxu0 0.0
    %92 = vmatpush1.msra.mxu0 0.0
    %93 = vmatprep.subr.mxu0 0.0
    %94 = vmatpush1.msra.mxu0 0.0
    %95 = vmatprep.subr.mxu0 0.0
    %96 = vmatpush1.msra.mxu0 0.0
    %97 = vmatprep.subr.mxu0 0.0
    %98 = vmatpush1.msra.mxu0 0.0
    %99 = vmatprep.subr.mxu0 0.0
    %100 = vmatpush1.msra.mxu0 0.0
    %101 = vmatprep.subr.mxu0 0.0
    %102 = vmatpush1.msra.mxu0 0.0
    %103 = vmatprep.subr.mxu0 0.0
    %104 = vmatpush1.msra.mxu0 0.0
    %105 = vmatprep.subr.mxu0 0.0
    %106 = vmatpush1.msra.mxu0 0.0
    %107 = vmatprep.subr.mxu0 0.0
    %108 = vmatpush1.msra.mxu0 0.0
    %109 = vmatprep.subr.mxu0 0.0
    %110 = vmatpush1.msra.mxu0 0.0
    %111 = vmatprep.subr.mxu0 0.0
    %112 = vmatpush1.msra.mxu0 0.0
    %113 = vmatprep.subr.mxu0 0.0
    %114 = vmatpush1.msra.mxu0 0.0
    %115 = vmatprep.subr.mxu0 0.0
    %116 = vmatpush1.msra.mxu0 0.0
    %117 = vmatprep.mubr.f32.mxu0 0.0
    %118 = vmatmul.mubr.f32.gmra.mrb[0].mxu0 %v48
    %v119 = vpop.f32.mrb[0].mxu0
    %v120 = vadd.f32 0.0, %v119
    %v121 = vpop.f32.mrb[0].mxu0
    %122 = vmatprep.mubr.f32.mxu0 0.0
    %123 = vmatmul.mubr.f32.gmra.mrb[0].mxu0 %v51
    %v124 = vpop.f32.mrb[0].mxu0
    %v125 = vadd.f32 0.0, %v124
    %v126 = vpop.f32.mrb[0].mxu0
    %127 = vdwg.mxu0
    %v128 = vlaneseq
    %v129 = vshrl.u32 %v128, 7
    %v130 = vlaneseq
    %v131 = vand.u32 %v130, 127
    %vm132 = vcmp.ge.s32.totalorder %v129, %v131
    %134 = vrot.lane.b32.xlu0 %v120, 112
    %v135 = vpop.permute.xlu0 %134
    %vm136 = vcmask 31744
    %v137 = vsel %vm136, %v120, 0
    %v139 = vsel %vm136, %v135, 0
    %141 = vmatprep.subr.mxu0 0.0
    %142 = vmatpush1.xpose.msra.mxu0 %v139
    %143 = vmatprep.subr.mxu0 0.0
    %144 = vmatpush1.xpose.msra.mxu0 0.0
    %145 = vmatprep.subr.mxu0 0.0
    %146 = vmatpush1.xpose.msra.mxu0 0.0
    %147 = vmatprep.subr.mxu0 0.0
    %148 = vmatpush1.xpose.msra.mxu0 0.0
    %149 = vmatprep.subr.mxu0 0.0
    %150 = vmatpush1.xpose.msra.mxu0 0.0
    %151 = vmatprep.subr.mxu0 0.0
    %152 = vmatpush1.xpose.msra.mxu0 0.0
    %153 = vmatprep.subr.mxu0 0.0
    %154 = vmatpush1.xpose.msra.mxu0 0.0
    %155 = vmatprep.subr.mxu0 0.0
    %156 = vmatpush1.xpose.msra.mxu0 0.0
    %157 = vmatprep.subr.mxu0 0.0
    %158 = vmatpush1.xpose.msra.mxu0 0.0
    %159 = vmatprep.subr.mxu0 0.0
    %160 = vmatpush1.xpose.msra.mxu0 0.0
    %161 = vmatprep.subr.mxu0 0.0
    %162 = vmatpush1.xpose.msra.mxu0 0.0
    %163 = vmatprep.subr.mxu0 0.0
    %164 = vmatpush1.xpose.msra.mxu0 0.0
    %165 = vmatprep.subr.mxu0 0.0
    %166 = vmatpush1.xpose.msra.mxu0 0.0
    %167 = vmatprep.subr.mxu0 0.0
    %168 = vmatpush1.xpose.msra.mxu0 0.0
    %169 = vmatprep.subr.mxu0 0.0
    %170 = vmatpush1.xpose.msra.mxu0 0.0
    %171 = vmatprep.subr.mxu0 0.0
    %172 = vmatpush1.xpose.msra.mxu0 0.0
    %173 = vmatprep.subr.mxu0 0.0
    %174 = vmatpush1.xpose.msra.mxu0 0.0
    %175 = vmatprep.subr.mxu0 0.0
    %176 = vmatpush1.xpose.msra.mxu0 0.0
    %177 = vmatprep.subr.mxu0 0.0
    %178 = vmatpush1.xpose.msra.mxu0 0.0
    %179 = vmatprep.subr.mxu0 0.0
    %180 = vmatpush1.xpose.msra.mxu0 0.0
    %181 = vmatprep.subr.mxu0 0.0
    %182 = vmatpush1.xpose.msra.mxu0 0.0
    %183 = vmatprep.subr.mxu0 0.0
    %184 = vmatpush1.xpose.msra.mxu0 0.0
    %185 = vmatprep.subr.mxu0 0.0
    %186 = vmatpush1.xpose.msra.mxu0 0.0
    %187 = vmatprep.subr.mxu0 0.0
    %188 = vmatpush1.xpose.msra.mxu0 0.0
    %189 = vmatprep.subr.mxu0 0.0
    %190 = vmatpush1.xpose.msra.mxu0 0.0
    %191 = vmatprep.subr.mxu0 0.0
    %192 = vmatpush1.xpose.msra.mxu0 0.0
    %193 = vmatprep.subr.mxu0 0.0
    %194 = vmatpush1.xpose.msra.mxu0 0.0
    %195 = vmatprep.subr.mxu0 0.0
    %196 = vmatpush1.xpose.msra.mxu0 0.0
    %197 = vmatprep.subr.mxu0 0.0
    %198 = vmatpush1.xpose.msra.mxu0 0.0
    %199 = vmatprep.subr.mxu0 0.0
    %200 = vmatpush1.xpose.msra.mxu0 0.0
    %201 = vmatprep.subr.mxu0 0.0
    %202 = vmatpush1.xpose.msra.mxu0 0.0
    %203 = vmatprep.subr.mxu0 0.0
    %204 = vmatpush1.xpose.msra.mxu0 0.0
    %205 = vmatprep.mubr.f32.mxu0 0.0
    %206 = vmatmul.mubr.f32.gmra.mrb[0].mxu0 %v137
    %v207 = vpop.f32.mrb[0].mxu0
    %v208 = vadd.f32 0.0, %v207
    %v209 = vpop.f32.mrb[0].mxu0
    %210 = vdwg.mxu0
    %v211 = vsel %vm132, %v208, -inf
    %vm212 = vcmask 64512
    %v213 = vsel %vm212, %v211, -inf
    %214 = vmax.xlane.f32.xlu0 %v213
    %v215 = vpop.xlane.xlu0 %214
    %v216 = vsub.f32 %v211, %v215
    %v217 = vmul.f32 %v216, 1.442695
    %v218 = vpow.pop %v217
    %v219 = vsel %vm212, %v218, 0.0
    %220 = vadd.xlane.f32.xlu0 %v219
    %v221 = vpop.xlane.xlu0 %220
    %222 = vrot.lane.b32.xlu0 %v120, 96
    %v223 = vpop.permute.xlu0 %222
    %v226 = vsel %vm212, %v218, 0
    %228 = vmatprep.subr.mxu0 0.0
    %229 = vmatpush1.msra.mxu0 %v223
    %230 = vmatprep.subr.mxu0 0.0
    %231 = vmatpush1.msra.mxu0 0.0
    %232 = vmatprep.subr.mxu0 0.0
    %233 = vmatpush1.msra.mxu0 0.0
    %234 = vmatprep.subr.mxu0 0.0
    %235 = vmatpush1.msra.mxu0 0.0
    %236 = vmatprep.subr.mxu0 0.0
    %237 = vmatpush1.msra.mxu0 0.0
    %238 = vmatprep.subr.mxu0 0.0
    %239 = vmatpush1.msra.mxu0 0.0
    %240 = vmatprep.subr.mxu0 0.0
    %241 = vmatpush1.msra.mxu0 0.0
    %242 = vmatprep.subr.mxu0 0.0
    %243 = vmatpush1.msra.mxu0 0.0
    %244 = vmatprep.subr.mxu0 0.0
    %245 = vmatpush1.msra.mxu0 0.0
    %246 = vmatprep.subr.mxu0 0.0
    %247 = vmatpush1.msra.mxu0 0.0
    %248 = vmatprep.subr.mxu0 0.0
    %249 = vmatpush1.msra.mxu0 0.0
    %250 = vmatprep.subr.mxu0 0.0
    %251 = vmatpush1.msra.mxu0 0.0
    %252 = vmatprep.subr.mxu0 0.0
    %253 = vmatpush1.msra.mxu0 0.0
    %254 = vmatprep.subr.mxu0 0.0
    %255 = vmatpush1.msra.mxu0 0.0
    %256 = vmatprep.subr.mxu0 0.0
    %257 = vmatpush1.msra.mxu0 0.0
    %258 = vmatprep.subr.mxu0 0.0
    %259 = vmatpush1.msra.mxu0 0.0
    %260 = vmatprep.subr.mxu0 0.0
    %261 = vmatpush1.msra.mxu0 0.0
    %262 = vmatprep.subr.mxu0 0.0
    %263 = vmatpush1.msra.mxu0 0.0
    %264 = vmatprep.subr.mxu0 0.0
    %265 = vmatpush1.msra.mxu0 0.0
    %266 = vmatprep.subr.mxu0 0.0
    %267 = vmatpush1.msra.mxu0 0.0
    %268 = vmatprep.subr.mxu0 0.0
    %269 = vmatpush1.msra.mxu0 0.0
    %270 = vmatprep.subr.mxu0 0.0
    %271 = vmatpush1.msra.mxu0 0.0
    %272 = vmatprep.subr.mxu0 0.0
    %273 = vmatpush1.msra.mxu0 0.0
    %274 = vmatprep.subr.mxu0 0.0
    %275 = vmatpush1.msra.mxu0 0.0
    %276 = vmatprep.subr.mxu0 0.0
    %277 = vmatpush1.msra.mxu0 0.0
    %278 = vmatprep.subr.mxu0 0.0
    %279 = vmatpush1.msra.mxu0 0.0
    %280 = vmatprep.subr.mxu0 0.0
    %281 = vmatpush1.msra.mxu0 0.0
    %282 = vmatprep.subr.mxu0 0.0
    %283 = vmatpush1.msra.mxu0 0.0
    %284 = vmatprep.subr.mxu0 0.0
    %285 = vmatpush1.msra.mxu0 0.0
    %286 = vmatprep.subr.mxu0 0.0
    %287 = vmatpush1.msra.mxu0 0.0
    %288 = vmatprep.subr.mxu0 0.0
    %289 = vmatpush1.msra.mxu0 0.0
    %290 = vmatprep.subr.mxu0 0.0
    %291 = vmatpush1.msra.mxu0 0.0
    %292 = vmatprep.mubr.f32.mxu0 0.0
    %293 = vmatmul.mubr.f32.gmra.mrb[0].mxu0 %v226
    %v294 = vpop.f32.mrb[0].mxu0
    %v295 = vadd.f32 0.0, %v294
    %v296 = vpop.f32.mrb[0].mxu0
    %297 = vdwg.mxu0
    %v298 = vrcp.pop %v221
    %v299 = vmul.f32 1.0, %v298
    %v300 = vmul.f32 %v295, %v299
    %301 = vrot.lane.b32.xlu0 %v120, 124
    %v302 = vpop.permute.xlu0 %301
    %303 = vrot.lane.b32.xlu0 %v120, 108
    %v304 = vpop.permute.xlu0 %303
    %v305 = vsel %vm136, %v302, 0
    %v307 = vsel %vm136, %v304, 0
    %309 = vmatprep.subr.mxu0 0.0
    %310 = vmatpush1.xpose.msra.mxu0 %v307
    %311 = vmatprep.subr.mxu0 0.0
    %312 = vmatpush1.xpose.msra.mxu0 0.0
    %313 = vmatprep.subr.mxu0 0.0
    %314 = vmatpush1.xpose.msra.mxu0 0.0
    %315 = vmatprep.subr.mxu0 0.0
    %316 = vmatpush1.xpose.msra.mxu0 0.0
    %317 = vmatprep.subr.mxu0 0.0
    %318 = vmatpush1.xpose.msra.mxu0 0.0
    %319 = vmatprep.subr.mxu0 0.0
    %320 = vmatpush1.xpose.msra.mxu0 0.0
    %321 = vmatprep.subr.mxu0 0.0
    %322 = vmatpush1.xpose.msra.mxu0 0.0
    %323 = vmatprep.subr.mxu0 0.0
    %324 = vmatpush1.xpose.msra.mxu0 0.0
    %325 = vmatprep.subr.mxu0 0.0
    %326 = vmatpush1.xpose.msra.mxu0 0.0
    %327 = vmatprep.subr.mxu0 0.0
    %328 = vmatpush1.xpose.msra.mxu0 0.0
    %329 = vmatprep.subr.mxu0 0.0
    %330 = vmatpush1.xpose.msra.mxu0 0.0
    %331 = vmatprep.subr.mxu0 0.0
    %332 = vmatpush1.xpose.msra.mxu0 0.0
    %333 = vmatprep.subr.mxu0 0.0
    %334 = vmatpush1.xpose.msra.mxu0 0.0
    %335 = vmatprep.subr.mxu0 0.0
    %336 = vmatpush1.xpose.msra.mxu0 0.0
    %337 = vmatprep.subr.mxu0 0.0
    %338 = vmatpush1.xpose.msra.mxu0 0.0
    %339 = vmatprep.subr.mxu0 0.0
    %340 = vmatpush1.xpose.msra.mxu0 0.0
    %341 = vmatprep.subr.mxu0 0.0
    %342 = vmatpush1.xpose.msra.mxu0 0.0
    %343 = vmatprep.subr.mxu0 0.0
    %344 = vmatpush1.xpose.msra.mxu0 0.0
    %345 = vmatprep.subr.mxu0 0.0
    %346 = vmatpush1.xpose.msra.mxu0 0.0
    %347 = vmatprep.subr.mxu0 0.0
    %348 = vmatpush1.xpose.msra.mxu0 0.0
    %349 = vmatprep.subr.mxu0 0.0
    %350 = vmatpush1.xpose.msra.mxu0 0.0
    %351 = vmatprep.subr.mxu0 0.0
    %352 = vmatpush1.xpose.msra.mxu0 0.0
    %353 = vmatprep.subr.mxu0 0.0
    %354 = vmatpush1.xpose.msra.mxu0 0.0
    %355 = vmatprep.subr.mxu0 0.0
    %356 = vmatpush1.xpose.msra.mxu0 0.0
    %357 = vmatprep.subr.mxu0 0.0
    %358 = vmatpush1.xpose.msra.mxu0 0.0
    %359 = vmatprep.subr.mxu0 0.0
    %360 = vmatpush1.xpose.msra.mxu0 0.0
    %361 = vmatprep.subr.mxu0 0.0
    %362 = vmatpush1.xpose.msra.mxu0 0.0
    %363 = vmatprep.subr.mxu0 0.0
    %364 = vmatpush1.xpose.msra.mxu0 0.0
    %365 = vmatprep.subr.mxu0 0.0
    %366 = vmatpush1.xpose.msra.mxu0 0.0
    %367 = vmatprep.subr.mxu0 0.0
    %368 = vmatpush1.xpose.msra.mxu0 0.0
    %369 = vmatprep.subr.mxu0 0.0
    %370 = vmatpush1.xpose.msra.mxu0 0.0
    %371 = vmatprep.subr.mxu0 0.0
    %372 = vmatpush1.xpose.msra.mxu0 0.0
    %373 = vmatprep.mubr.f32.mxu0 0.0
    %374 = vmatmul.mubr.f32.gmra.mrb[0].mxu0 %v305
    %v375 = vpop.f32.mrb[0].mxu0
    %v376 = vadd.f32 0.0, %v375
    %v377 = vpop.f32.mrb[0].mxu0
    %378 = vdwg.mxu0
    %v379 = vsel %vm132, %v376, -inf
    %v380 = vsel %vm212, %v379, -inf
    %381 = vmax.xlane.f32.xlu0 %v380
    %v382 = vpop.xlane.xlu0 %381
    %v383 = vsub.f32 %v379, %v382
    %v384 = vmul.f32 %v383, 1.442695
    %v385 = vpow.pop %v384
    %v386 = vsel %vm212, %v385, 0.0
    %387 = vadd.xlane.f32.xlu0 %v386
    %v388 = vpop.xlane.xlu0 %387
    %389 = vrot.lane.b32.xlu0 %v120, 92
    %v390 = vpop.permute.xlu0 %389
    %v393 = vsel %vm212, %v385, 0
    %395 = vmatprep.subr.mxu0 0.0
    %396 = vmatpush1.msra.mxu0 %v390
    %397 = vmatprep.subr.mxu0 0.0
    %398 = vmatpush1.msra.mxu0 0.0
    %399 = vmatprep.subr.mxu0 0.0
    %400 = vmatpush1.msra.mxu0 0.0
    %401 = vmatprep.subr.mxu0 0.0
    %402 = vmatpush1.msra.mxu0 0.0
    %403 = vmatprep.subr.mxu0 0.0
    %404 = vmatpush1.msra.mxu0 0.0
    %405 = vmatprep.subr.mxu0 0.0
    %406 = vmatpush1.msra.mxu0 0.0
    %407 = vmatprep.subr.mxu0 0.0
    %408 = vmatpush1.msra.mxu0 0.0
    %409 = vmatprep.subr.mxu0 0.0
    %410 = vmatpush1.msra.mxu0 0.0
    %411 = vmatprep.subr.mxu0 0.0
    %412 = vmatpush1.msra.mxu0 0.0
    %413 = vmatprep.subr.mxu0 0.0
    %414 = vmatpush1.msra.mxu0 0.0
    %415 = vmatprep.subr.mxu0 0.0
    %416 = vmatpush1.msra.mxu0 0.0
    %417 = vmatprep.subr.mxu0 0.0
    %418 = vmatpush1.msra.mxu0 0.0
    %419 = vmatprep.subr.mxu0 0.0
    %420 = vmatpush1.msra.mxu0 0.0
    %421 = vmatprep.subr.mxu0 0.0
    %422 = vmatpush1.msra.mxu0 0.0
    %423 = vmatprep.subr.mxu0 0.0
    %424 = vmatpush1.msra.mxu0 0.0
    %425 = vmatprep.subr.mxu0 0.0
    %426 = vmatpush1.msra.mxu0 0.0
    %427 = vmatprep.subr.mxu0 0.0
    %428 = vmatpush1.msra.mxu0 0.0
    %429 = vmatprep.subr.mxu0 0.0
    %430 = vmatpush1.msra.mxu0 0.0
    %431 = vmatprep.subr.mxu0 0.0
    %432 = vmatpush1.msra.mxu0 0.0
    %433 = vmatprep.subr.mxu0 0.0
    %434 = vmatpush1.msra.mxu0 0.0
    %435 = vmatprep.subr.mxu0 0.0
    %436 = vmatpush1.msra.mxu0 0.0
    %437 = vmatprep.subr.mxu0 0.0
    %438 = vmatpush1.msra.mxu0 0.0
    %439 = vmatprep.subr.mxu0 0.0
    %440 = vmatpush1.msra.mxu0 0.0
    %441 = vmatprep.subr.mxu0 0.0
    %442 = vmatpush1.msra.mxu0 0.0
    %443 = vmatprep.subr.mxu0 0.0
    %444 = vmatpush1.msra.mxu0 0.0
    %445 = vmatprep.subr.mxu0 0.0
    %446 = vmatpush1.msra.mxu0 0.0
    %447 = vmatprep.subr.mxu0 0.0
    %448 = vmatpush1.msra.mxu0 0.0
    %449 = vmatprep.subr.mxu0 0.0
    %450 = vmatpush1.msra.mxu0 0.0
    %451 = vmatprep.subr.mxu0 0.0
    %452 = vmatpush1.msra.mxu0 0.0
    %453 = vmatprep.subr.mxu0 0.0
    %454 = vmatpush1.msra.mxu0 0.0
    %455 = vmatprep.subr.mxu0 0.0
    %456 = vmatpush1.msra.mxu0 0.0
    %457 = vmatprep.subr.mxu0 0.0
    %458 = vmatpush1.msra.mxu0 0.0
    %459 = vmatprep.mubr.f32.mxu0 0.0
    %460 = vmatmul.mubr.f32.gmra.mrb[0].mxu0 %v393
    %v461 = vpop.f32.mrb[0].mxu0
    %v462 = vadd.f32 0.0, %v461
    %v463 = vpop.f32.mrb[0].mxu0
    %464 = vdwg.mxu0
    %v465 = vrcp.pop %v388
    %v466 = vmul.f32 1.0, %v465
    %v467 = vmul.f32 %v462, %v466
    %468 = vrot.lane.b32.xlu0 %v120, 120
    %v469 = vpop.permute.xlu0 %468
    %470 = vrot.lane.b32.xlu0 %v120, 104
    %v471 = vpop.permute.xlu0 %470
    %v472 = vsel %vm136, %v469, 0
    %v474 = vsel %vm136, %v471, 0
    %476 = vmatprep.subr.mxu0 0.0
    %477 = vmatpush1.xpose.msra.mxu0 %v474
    %478 = vmatprep.subr.mxu0 0.0
    %479 = vmatpush1.xpose.msra.mxu0 0.0
    %480 = vmatprep.subr.mxu0 0.0
    %481 = vmatpush1.xpose.msra.mxu0 0.0
    %482 = vmatprep.subr.mxu0 0.0
    %483 = vmatpush1.xpose.msra.mxu0 0.0
    %484 = vmatprep.subr.mxu0 0.0
    %485 = vmatpush1.xpose.msra.mxu0 0.0
    %486 = vmatprep.subr.mxu0 0.0
    %487 = vmatpush1.xpose.msra.mxu0 0.0
    %488 = vmatprep.subr.mxu0 0.0
    %489 = vmatpush1.xpose.msra.mxu0 0.0
    %490 = vmatprep.subr.mxu0 0.0
    %491 = vmatpush1.xpose.msra.mxu0 0.0
    %492 = vmatprep.subr.mxu0 0.0
    %493 = vmatpush1.xpose.msra.mxu0 0.0
    %494 = vmatprep.subr.mxu0 0.0
    %495 = vmatpush1.xpose.msra.mxu0 0.0
    %496 = vmatprep.subr.mxu0 0.0
    %497 = vmatpush1.xpose.msra.mxu0 0.0
    %498 = vmatprep.subr.mxu0 0.0
    %499 = vmatpush1.xpose.msra.mxu0 0.0
    %500 = vmatprep.subr.mxu0 0.0
    %501 = vmatpush1.xpose.msra.mxu0 0.0
    %502 = vmatprep.subr.mxu0 0.0
    %503 = vmatpush1.xpose.msra.mxu0 0.0
    %504 = vmatprep.subr.mxu0 0.0
    %505 = vmatpush1.xpose.msra.mxu0 0.0
    %506 = vmatprep.subr.mxu0 0.0
    %507 = vmatpush1.xpose.msra.mxu0 0.0
    %508 = vmatprep.subr.mxu0 0.0
    %509 = vmatpush1.xpose.msra.mxu0 0.0
    %510 = vmatprep.subr.mxu0 0.0
    %511 = vmatpush1.xpose.msra.mxu0 0.0
    %512 = vmatprep.subr.mxu0 0.0
    %513 = vmatpush1.xpose.msra.mxu0 0.0
    %514 = vmatprep.subr.mxu0 0.0
    %515 = vmatpush1.xpose.msra.mxu0 0.0
    %516 = vmatprep.subr.mxu0 0.0
    %517 = vmatpush1.xpose.msra.mxu0 0.0
    %518 = vmatprep.subr.mxu0 0.0
    %519 = vmatpush1.xpose.msra.mxu0 0.0
    %520 = vmatprep.subr.mxu0 0.0
    %521 = vmatpush1.xpose.msra.mxu0 0.0
    %522 = vmatprep.subr.mxu0 0.0
    %523 = vmatpush1.xpose.msra.mxu0 0.0
    %524 = vmatprep.subr.mxu0 0.0
    %525 = vmatpush1.xpose.msra.mxu0 0.0
    %526 = vmatprep.subr.mxu0 0.0
    %527 = vmatpush1.xpose.msra.mxu0 0.0
    %528 = vmatprep.subr.mxu0 0.0
    %529 = vmatpush1.xpose.msra.mxu0 0.0
    %530 = vmatprep.subr.mxu0 0.0
    %531 = vmatpush1.xpose.msra.mxu0 0.0
    %532 = vmatprep.subr.mxu0 0.0
    %533 = vmatpush1.xpose.msra.mxu0 0.0
    %534 = vmatprep.subr.mxu0 0.0
    %535 = vmatpush1.xpose.msra.mxu0 0.0
    %536 = vmatprep.subr.mxu0 0.0
    %537 = vmatpush1.xpose.msra.mxu0 0.0
    %538 = vmatprep.subr.mxu0 0.0
    %539 = vmatpush1.xpose.msra.mxu0 0.0
    %540 = vmatprep.mubr.f32.mxu0 0.0
    %541 = vmatmul.mubr.f32.gmra.mrb[0].mxu0 %v472
    %v542 = vpop.f32.mrb[0].mxu0
    %v543 = vadd.f32 0.0, %v542
    %v544 = vpop.f32.mrb[0].mxu0
    %545 = vdwg.mxu0
    %v546 = vsel %vm132, %v543, -inf
    %v547 = vsel %vm212, %v546, -inf
    %548 = vmax.xlane.f32.xlu0 %v547
    %v549 = vpop.xlane.xlu0 %548
    %v550 = vsub.f32 %v546, %v549
    %v551 = vmul.f32 %v550, 1.442695
    %v552 = vpow.pop %v551
    %v553 = vsel %vm212, %v552, 0.0
    %554 = vadd.xlane.f32.xlu0 %v553
    %v555 = vpop.xlane.xlu0 %554
    %556 = vrot.lane.b32.xlu0 %v120, 88
    %v557 = vpop.permute.xlu0 %556
    %v560 = vsel %vm212, %v552, 0
    %562 = vmatprep.subr.mxu0 0.0
    %563 = vmatpush1.msra.mxu0 %v557
    %564 = vmatprep.subr.mxu0 0.0
    %565 = vmatpush1.msra.mxu0 0.0
    %566 = vmatprep.subr.mxu0 0.0
    %567 = vmatpush1.msra.mxu0 0.0
    %568 = vmatprep.subr.mxu0 0.0
    %569 = vmatpush1.msra.mxu0 0.0
    %570 = vmatprep.subr.mxu0 0.0
    %571 = vmatpush1.msra.mxu0 0.0
    %572 = vmatprep.subr.mxu0 0.0
    %573 = vmatpush1.msra.mxu0 0.0
    %574 = vmatprep.subr.mxu0 0.0
    %575 = vmatpush1.msra.mxu0 0.0
    %576 = vmatprep.subr.mxu0 0.0
    %577 = vmatpush1.msra.mxu0 0.0
    %578 = vmatprep.subr.mxu0 0.0
    %579 = vmatpush1.msra.mxu0 0.0
    %580 = vmatprep.subr.mxu0 0.0
    %581 = vmatpush1.msra.mxu0 0.0
    %582 = vmatprep.subr.mxu0 0.0
    %583 = vmatpush1.msra.mxu0 0.0
    %584 = vmatprep.subr.mxu0 0.0
    %585 = vmatpush1.msra.mxu0 0.0
    %586 = vmatprep.subr.mxu0 0.0
    %587 = vmatpush1.msra.mxu0 0.0
    %588 = vmatprep.subr.mxu0 0.0
    %589 = vmatpush1.msra.mxu0 0.0
    %590 = vmatprep.subr.mxu0 0.0
    %591 = vmatpush1.msra.mxu0 0.0
    %592 = vmatprep.subr.mxu0 0.0
    %593 = vmatpush1.msra.mxu0 0.0
    %594 = vmatprep.subr.mxu0 0.0
    %595 = vmatpush1.msra.mxu0 0.0
    %596 = vmatprep.subr.mxu0 0.0
    %597 = vmatpush1.msra.mxu0 0.0
    %598 = vmatprep.subr.mxu0 0.0
    %599 = vmatpush1.msra.mxu0 0.0
    %600 = vmatprep.subr.mxu0 0.0
    %601 = vmatpush1.msra.mxu0 0.0
    %602 = vmatprep.subr.mxu0 0.0
    %603 = vmatpush1.msra.mxu0 0.0
    %604 = vmatprep.subr.mxu0 0.0
    %605 = vmatpush1.msra.mxu0 0.0
    %606 = vmatprep.subr.mxu0 0.0
    %607 = vmatpush1.msra.mxu0 0.0
    %608 = vmatprep.subr.mxu0 0.0
    %609 = vmatpush1.msra.mxu0 0.0
    %610 = vmatprep.subr.mxu0 0.0
    %611 = vmatpush1.msra.mxu0 0.0
    %612 = vmatprep.subr.mxu0 0.0
    %613 = vmatpush1.msra.mxu0 0.0
    %614 = vmatprep.subr.mxu0 0.0
    %615 = vmatpush1.msra.mxu0 0.0
    %616 = vmatprep.subr.mxu0 0.0
    %617 = vmatpush1.msra.mxu0 0.0
    %618 = vmatprep.subr.mxu0 0.0
    %619 = vmatpush1.msra.mxu0 0.0
    %620 = vmatprep.subr.mxu0 0.0
    %621 = vmatpush1.msra.mxu0 0.0
    %622 = vmatprep.subr.mxu0 0.0
    %623 = vmatpush1.msra.mxu0 0.0
    %624 = vmatprep.subr.mxu0 0.0
    %625 = vmatpush1.msra.mxu0 0.0
    %626 = vmatprep.mubr.f32.mxu0 0.0
    %627 = vmatmul.mubr.f32.gmra.mrb[0].mxu0 %v560
    %v628 = vpop.f32.mrb[0].mxu0
    %v629 = vadd.f32 0.0, %v628
    %v630 = vpop.f32.mrb[0].mxu0
    %631 = vdwg.mxu0
    %v632 = vrcp.pop %v555
    %v633 = vmul.f32 1.0, %v632
    %v634 = vmul.f32 %v629, %v633
    %635 = vrot.lane.b32.xlu0 %v120, 116
    %v636 = vpop.permute.xlu0 %635
    %637 = vrot.lane.b32.xlu0 %v120, 100
    %v638 = vpop.permute.xlu0 %637
    %v639 = vsel %vm136, %v636, 0
    %v641 = vsel %vm136, %v638, 0
    %643 = vmatprep.subr.mxu0 0.0
    %644 = vmatpush1.xpose.msra.mxu0 %v641
    %645 = vmatprep.subr.mxu0 0.0
    %646 = vmatpush1.xpose.msra.mxu0 0.0
    %647 = vmatprep.subr.mxu0 0.0
    %648 = vmatpush1.xpose.msra.mxu0 0.0
    %649 = vmatprep.subr.mxu0 0.0
    %650 = vmatpush1.xpose.msra.mxu0 0.0
    %651 = vmatprep.subr.mxu0 0.0
    %652 = vmatpush1.xpose.msra.mxu0 0.0
    %653 = vmatprep.subr.mxu0 0.0
    %654 = vmatpush1.xpose.msra.mxu0 0.0
    %655 = vmatprep.subr.mxu0 0.0
    %656 = vmatpush1.xpose.msra.mxu0 0.0
    %657 = vmatprep.subr.mxu0 0.0
    %658 = vmatpush1.xpose.msra.mxu0 0.0
    %659 = vmatprep.subr.mxu0 0.0
    %660 = vmatpush1.xpose.msra.mxu0 0.0
    %661 = vmatprep.subr.mxu0 0.0
    %662 = vmatpush1.xpose.msra.mxu0 0.0
    %663 = vmatprep.subr.mxu0 0.0
    %664 = vmatpush1.xpose.msra.mxu0 0.0
    %665 = vmatprep.subr.mxu0 0.0
    %666 = vmatpush1.xpose.msra.mxu0 0.0
    %667 = vmatprep.subr.mxu0 0.0
    %668 = vmatpush1.xpose.msra.mxu0 0.0
    %669 = vmatprep.subr.mxu0 0.0
    %670 = vmatpush1.xpose.msra.mxu0 0.0
    %671 = vmatprep.subr.mxu0 0.0
    %672 = vmatpush1.xpose.msra.mxu0 0.0
    %673 = vmatprep.subr.mxu0 0.0
    %674 = vmatpush1.xpose.msra.mxu0 0.0
    %675 = vmatprep.subr.mxu0 0.0
    %676 = vmatpush1.xpose.msra.mxu0 0.0
    %677 = vmatprep.subr.mxu0 0.0
    %678 = vmatpush1.xpose.msra.mxu0 0.0
    %679 = vmatprep.subr.mxu0 0.0
    %680 = vmatpush1.xpose.msra.mxu0 0.0
    %681 = vmatprep.subr.mxu0 0.0
    %682 = vmatpush1.xpose.msra.mxu0 0.0
    %683 = vmatprep.subr.mxu0 0.0
    %684 = vmatpush1.xpose.msra.mxu0 0.0
    %685 = vmatprep.subr.mxu0 0.0
    %686 = vmatpush1.xpose.msra.mxu0 0.0
    %687 = vmatprep.subr.mxu0 0.0
    %688 = vmatpush1.xpose.msra.mxu0 0.0
    %689 = vmatprep.subr.mxu0 0.0
    %690 = vmatpush1.xpose.msra.mxu0 0.0
    %691 = vmatprep.subr.mxu0 0.0
    %692 = vmatpush1.xpose.msra.mxu0 0.0
    %693 = vmatprep.subr.mxu0 0.0
    %694 = vmatpush1.xpose.msra.mxu0 0.0
    %695 = vmatprep.subr.mxu0 0.0
    %696 = vmatpush1.xpose.msra.mxu0 0.0
    %697 = vmatprep.subr.mxu0 0.0
    %698 = vmatpush1.xpose.msra.mxu0 0.0
    %699 = vmatprep.subr.mxu0 0.0
    %700 = vmatpush1.xpose.msra.mxu0 0.0
    %701 = vmatprep.subr.mxu0 0.0
    %702 = vmatpush1.xpose.msra.mxu0 0.0
    %703 = vmatprep.subr.mxu0 0.0
    %704 = vmatpush1.xpose.msra.mxu0 0.0
    %705 = vmatprep.subr.mxu0 0.0
    %706 = vmatpush1.xpose.msra.mxu0 0.0
    %707 = vmatprep.mubr.f32.mxu0 0.0
    %708 = vmatmul.mubr.f32.gmra.mrb[0].mxu0 %v639
    %v709 = vpop.f32.mrb[0].mxu0
    %v710 = vadd.f32 0.0, %v709
    %v711 = vpop.f32.mrb[0].mxu0
    %712 = vdwg.mxu0
    %v713 = vsel %vm132, %v710, -inf
    %v714 = vsel %vm212, %v713, -inf
    %715 = vmax.xlane.f32.xlu0 %v714
    %v716 = vpop.xlane.xlu0 %715
    %v717 = vsub.f32 %v713, %v716
    %v718 = vmul.f32 %v717, 1.442695
    %v719 = vpow.pop %v718
    %v720 = vsel %vm212, %v719, 0.0
    %721 = vadd.xlane.f32.xlu0 %v720
    %v722 = vpop.xlane.xlu0 %721
    %723 = vrot.lane.b32.xlu0 %v120, 84
    %v724 = vpop.permute.xlu0 %723
    %v727 = vsel %vm212, %v719, 0
    %729 = vmatprep.subr.mxu0 0.0
    %730 = vmatpush1.msra.mxu0 %v724
    %731 = vmatprep.subr.mxu0 0.0
    %732 = vmatpush1.msra.mxu0 0.0
    %733 = vmatprep.subr.mxu0 0.0
    %734 = vmatpush1.msra.mxu0 0.0
    %735 = vmatprep.subr.mxu0 0.0
    %736 = vmatpush1.msra.mxu0 0.0
    %737 = vmatprep.subr.mxu0 0.0
    %738 = vmatpush1.msra.mxu0 0.0
    %739 = vmatprep.subr.mxu0 0.0
    %740 = vmatpush1.msra.mxu0 0.0
    %741 = vmatprep.subr.mxu0 0.0
    %742 = vmatpush1.msra.mxu0 0.0
    %743 = vmatprep.subr.mxu0 0.0
    %744 = vmatpush1.msra.mxu0 0.0
    %745 = vmatprep.subr.mxu0 0.0
    %746 = vmatpush1.msra.mxu0 0.0
    %747 = vmatprep.subr.mxu0 0.0
    %748 = vmatpush1.msra.mxu0 0.0
    %749 = vmatprep.subr.mxu0 0.0
    %750 = vmatpush1.msra.mxu0 0.0
    %751 = vmatprep.subr.mxu0 0.0
    %752 = vmatpush1.msra.mxu0 0.0
    %753 = vmatprep.subr.mxu0 0.0
    %754 = vmatpush1.msra.mxu0 0.0
    %755 = vmatprep.subr.mxu0 0.0
    %756 = vmatpush1.msra.mxu0 0.0
    %757 = vmatprep.subr.mxu0 0.0
    %758 = vmatpush1.msra.mxu0 0.0
    %759 = vmatprep.subr.mxu0 0.0
    %760 = vmatpush1.msra.mxu0 0.0
    %761 = vmatprep.subr.mxu0 0.0
    %762 = vmatpush1.msra.mxu0 0.0
    %763 = vmatprep.subr.mxu0 0.0
    %764 = vmatpush1.msra.mxu0 0.0
    %765 = vmatprep.subr.mxu0 0.0
    %766 = vmatpush1.msra.mxu0 0.0
    %767 = vmatprep.subr.mxu0 0.0
    %768 = vmatpush1.msra.mxu0 0.0
    %769 = vmatprep.subr.mxu0 0.0
    %770 = vmatpush1.msra.mxu0 0.0
    %771 = vmatprep.subr.mxu0 0.0
    %772 = vmatpush1.msra.mxu0 0.0
    %773 = vmatprep.subr.mxu0 0.0
    %774 = vmatpush1.msra.mxu0 0.0
    %775 = vmatprep.subr.mxu0 0.0
    %776 = vmatpush1.msra.mxu0 0.0
    %777 = vmatprep.subr.mxu0 0.0
    %778 = vmatpush1.msra.mxu0 0.0
    %779 = vmatprep.subr.mxu0 0.0
    %780 = vmatpush1.msra.mxu0 0.0
    %781 = vmatprep.subr.mxu0 0.0
    %782 = vmatpush1.msra.mxu0 0.0
    %783 = vmatprep.subr.mxu0 0.0
    %784 = vmatpush1.msra.mxu0 0.0
    %785 = vmatprep.subr.mxu0 0.0
    %786 = vmatpush1.msra.mxu0 0.0
    %787 = vmatprep.subr.mxu0 0.0
    %788 = vmatpush1.msra.mxu0 0.0
    %789 = vmatprep.subr.mxu0 0.0
    %790 = vmatpush1.msra.mxu0 0.0
    %791 = vmatprep.subr.mxu0 0.0
    %792 = vmatpush1.msra.mxu0 0.0
    %793 = vmatprep.mubr.f32.mxu0 0.0
    %794 = vmatmul.mubr.f32.gmra.mrb[0].mxu0 %v727
    %v795 = vpop.f32.mrb[0].mxu0
    %v796 = vadd.f32 0.0, %v795
    %v797 = vpop.f32.mrb[0].mxu0
    %798 = vdwg.mxu0
    %v799 = vrcp.pop %v722
    %v800 = vmul.f32 1.0, %v799
    %v801 = vmul.f32 %v796, %v800
    %803 = vrot.lane.b32.xlu0 %v467, 4
    %v804 = vpop.permute.xlu0 %803
    %807 = vrot.lane.b32.xlu0 %v634, 8
    %v808 = vpop.permute.xlu0 %807
    %811 = vrot.lane.b32.xlu0 %v801, 12
    %v812 = vpop.permute.xlu0 %811
    %v814 = vsel %vm136, %v300, %v804
    %v815 = vsel %vm212, %v814, %v808
    %vm816 = vcmask 97280
    %v817 = vsel %vm816, %v815, %v812
    %819 = vrot.lane.b32.xlu0 %v125, 112
    %v820 = vpop.permute.xlu0 %819
    %v821 = vsel %vm136, %v125, 0
    %v823 = vsel %vm136, %v820, 0
    %825 = vmatprep.subr.mxu0 0.0
    %826 = vmatpush1.xpose.msra.mxu0 %v823
    %827 = vmatprep.subr.mxu0 0.0
    %828 = vmatpush1.xpose.msra.mxu0 0.0
    %829 = vmatprep.subr.mxu0 0.0
    %830 = vmatpush1.xpose.msra.mxu0 0.0
    %831 = vmatprep.subr.mxu0 0.0
    %832 = vmatpush1.xpose.msra.mxu0 0.0
    %833 = vmatprep.subr.mxu0 0.0
    %834 = vmatpush1.xpose.msra.mxu0 0.0
    %835 = vmatprep.subr.mxu0 0.0
    %836 = vmatpush1.xpose.msra.mxu0 0.0
    %837 = vmatprep.subr.mxu0 0.0
    %838 = vmatpush1.xpose.msra.mxu0 0.0
    %839 = vmatprep.subr.mxu0 0.0
    %840 = vmatpush1.xpose.msra.mxu0 0.0
    %841 = vmatprep.subr.mxu0 0.0
    %842 = vmatpush1.xpose.msra.mxu0 0.0
    %843 = vmatprep.subr.mxu0 0.0
    %844 = vmatpush1.xpose.msra.mxu0 0.0
    %845 = vmatprep.subr.mxu0 0.0
    %846 = vmatpush1.xpose.msra.mxu0 0.0
    %847 = vmatprep.subr.mxu0 0.0
    %848 = vmatpush1.xpose.msra.mxu0 0.0
    %849 = vmatprep.subr.mxu0 0.0
    %850 = vmatpush1.xpose.msra.mxu0 0.0
    %851 = vmatprep.subr.mxu0 0.0
    %852 = vmatpush1.xpose.msra.mxu0 0.0
    %853 = vmatprep.subr.mxu0 0.0
    %854 = vmatpush1.xpose.msra.mxu0 0.0
    %855 = vmatprep.subr.mxu0 0.0
    %856 = vmatpush1.xpose.msra.mxu0 0.0
    %857 = vmatprep.subr.mxu0 0.0
    %858 = vmatpush1.xpose.msra.mxu0 0.0
    %859 = vmatprep.subr.mxu0 0.0
    %860 = vmatpush1.xpose.msra.mxu0 0.0
    %861 = vmatprep.subr.mxu0 0.0
    %862 = vmatpush1.xpose.msra.mxu0 0.0
    %863 = vmatprep.subr.mxu0 0.0
    %864 = vmatpush1.xpose.msra.mxu0 0.0
    %865 = vmatprep.subr.mxu0 0.0
    %866 = vmatpush1.xpose.msra.mxu0 0.0
    %867 = vmatprep.subr.mxu0 0.0
    %868 = vmatpush1.xpose.msra.mxu0 0.0
    %869 = vmatprep.subr.mxu0 0.0
    %870 = vmatpush1.xpose.msra.mxu0 0.0
    %871 = vmatprep.subr.mxu0 0.0
    %872 = vmatpush1.xpose.msra.mxu0 0.0
    %873 = vmatprep.subr.mxu0 0.0
    %874 = vmatpush1.xpose.msra.mxu0 0.0
    %875 = vmatprep.subr.mxu0 0.0
    %876 = vmatpush1.xpose.msra.mxu0 0.0
    %877 = vmatprep.subr.mxu0 0.0
    %878 = vmatpush1.xpose.msra.mxu0 0.0
    %879 = vmatprep.subr.mxu0 0.0
    %880 = vmatpush1.xpose.msra.mxu0 0.0
    %881 = vmatprep.subr.mxu0 0.0
    %882 = vmatpush1.xpose.msra.mxu0 0.0
    %883 = vmatprep.subr.mxu0 0.0
    %884 = vmatpush1.xpose.msra.mxu0 0.0
    %885 = vmatprep.subr.mxu0 0.0
    %886 = vmatpush1.xpose.msra.mxu0 0.0
    %887 = vmatprep.subr.mxu0 0.0
    %888 = vmatpush1.xpose.msra.mxu0 0.0
    %889 = vmatprep.mubr.f32.mxu0 0.0
    %890 = vmatmul.mubr.f32.gmra.mrb[0].mxu0 %v821
    %v891 = vpop.f32.mrb[0].mxu0
    %v892 = vadd.f32 0.0, %v891
    %v893 = vpop.f32.mrb[0].mxu0
    %894 = vdwg.mxu0
    %v895 = vsel %vm132, %v892, -inf
    %v896 = vsel %vm212, %v895, -inf
    %897 = vmax.xlane.f32.xlu0 %v896
    %v898 = vpop.xlane.xlu0 %897
    %v899 = vsub.f32 %v895, %v898
    %v900 = vmul.f32 %v899, 1.442695
    %v901 = vpow.pop %v900
    %v902 = vsel %vm212, %v901, 0.0
    %903 = vadd.xlane.f32.xlu0 %v902
    %v904 = vpop.xlane.xlu0 %903
    %905 = vrot.lane.b32.xlu0 %v125, 96
    %v906 = vpop.permute.xlu0 %905
    %v909 = vsel %vm212, %v901, 0
    %911 = vmatprep.subr.mxu0 0.0
    %912 = vmatpush1.msra.mxu0 %v906
    %913 = vmatprep.subr.mxu0 0.0
    %914 = vmatpush1.msra.mxu0 0.0
    %915 = vmatprep.subr.mxu0 0.0
    %916 = vmatpush1.msra.mxu0 0.0
    %917 = vmatprep.subr.mxu0 0.0
    %918 = vmatpush1.msra.mxu0 0.0
    %919 = vmatprep.subr.mxu0 0.0
    %920 = vmatpush1.msra.mxu0 0.0
    %921 = vmatprep.subr.mxu0 0.0
    %922 = vmatpush1.msra.mxu0 0.0
    %923 = vmatprep.subr.mxu0 0.0
    %924 = vmatpush1.msra.mxu0 0.0
    %925 = vmatprep.subr.mxu0 0.0
    %926 = vmatpush1.msra.mxu0 0.0
    %927 = vmatprep.subr.mxu0 0.0
    %928 = vmatpush1.msra.mxu0 0.0
    %929 = vmatprep.subr.mxu0 0.0
    %930 = vmatpush1.msra.mxu0 0.0
    %931 = vmatprep.subr.mxu0 0.0
    %932 = vmatpush1.msra.mxu0 0.0
    %933 = vmatprep.subr.mxu0 0.0
    %934 = vmatpush1.msra.mxu0 0.0
    %935 = vmatprep.subr.mxu0 0.0
    %936 = vmatpush1.msra.mxu0 0.0
    %937 = vmatprep.subr.mxu0 0.0
    %938 = vmatpush1.msra.mxu0 0.0
    %939 = vmatprep.subr.mxu0 0.0
    %940 = vmatpush1.msra.mxu0 0.0
    %941 = vmatprep.subr.mxu0 0.0
    %942 = vmatpush1.msra.mxu0 0.0
    %943 = vmatprep.subr.mxu0 0.0
    %944 = vmatpush1.msra.mxu0 0.0
    %945 = vmatprep.subr.mxu0 0.0
    %946 = vmatpush1.msra.mxu0 0.0
    %947 = vmatprep.subr.mxu0 0.0
    %948 = vmatpush1.msra.mxu0 0.0
    %949 = vmatprep.subr.mxu0 0.0
    %950 = vmatpush1.msra.mxu0 0.0
    %951 = vmatprep.subr.mxu0 0.0
    %952 = vmatpush1.msra.mxu0 0.0
    %953 = vmatprep.subr.mxu0 0.0
    %954 = vmatpush1.msra.mxu0 0.0
    %955 = vmatprep.subr.mxu0 0.0
    %956 = vmatpush1.msra.mxu0 0.0
    %957 = vmatprep.subr.mxu0 0.0
    %958 = vmatpush1.msra.mxu0 0.0
    %959 = vmatprep.subr.mxu0 0.0
    %960 = vmatpush1.msra.mxu0 0.0
    %961 = vmatprep.subr.mxu0 0.0
    %962 = vmatpush1.msra.mxu0 0.0
    %963 = vmatprep.subr.mxu0 0.0
    %964 = vmatpush1.msra.mxu0 0.0
    %965 = vmatprep.subr.mxu0 0.0
    %966 = vmatpush1.msra.mxu0 0.0
    %967 = vmatprep.subr.mxu0 0.0
    %968 = vmatpush1.msra.mxu0 0.0
    %969 = vmatprep.subr.mxu0 0.0
    %970 = vmatpush1.msra.mxu0 0.0
    %971 = vmatprep.subr.mxu0 0.0
    %972 = vmatpush1.msra.mxu0 0.0
    %973 = vmatprep.subr.mxu0 0.0
    %974 = vmatpush1.msra.mxu0 0.0
    %975 = vmatprep.mubr.f32.mxu0 0.0
    %976 = vmatmul.mubr.f32.gmra.mrb[0].mxu0 %v909
    %v977 = vpop.f32.mrb[0].mxu0
    %v978 = vadd.f32 0.0, %v977
    %v979 = vpop.f32.mrb[0].mxu0
    %980 = vdwg.mxu0
    %v981 = vrcp.pop %v904
    %v982 = vmul.f32 1.0, %v981
    %v983 = vmul.f32 %v978, %v982
    %984 = vrot.lane.b32.xlu0 %v125, 124
    %v985 = vpop.permute.xlu0 %984
    %986 = vrot.lane.b32.xlu0 %v125, 108
    %v987 = vpop.permute.xlu0 %986
    %v988 = vsel %vm136, %v985, 0
    %v990 = vsel %vm136, %v987, 0
    %992 = vmatprep.subr.mxu0 0.0
    %993 = vmatpush1.xpose.msra.mxu0 %v990
    %994 = vmatprep.subr.mxu0 0.0
    %995 = vmatpush1.xpose.msra.mxu0 0.0
    %996 = vmatprep.subr.mxu0 0.0
    %997 = vmatpush1.xpose.msra.mxu0 0.0
    %998 = vmatprep.subr.mxu0 0.0
    %999 = vmatpush1.xpose.msra.mxu0 0.0
    %1000 = vmatprep.subr.mxu0 0.0
    %1001 = vmatpush1.xpose.msra.mxu0 0.0
    %1002 = vmatprep.subr.mxu0 0.0
    %1003 = vmatpush1.xpose.msra.mxu0 0.0
    %1004 = vmatprep.subr.mxu0 0.0
    %1005 = vmatpush1.xpose.msra.mxu0 0.0
    %1006 = vmatprep.subr.mxu0 0.0
    %1007 = vmatpush1.xpose.msra.mxu0 0.0
    %1008 = vmatprep.subr.mxu0 0.0
    %1009 = vmatpush1.xpose.msra.mxu0 0.0
    %1010 = vmatprep.subr.mxu0 0.0
    %1011 = vmatpush1.xpose.msra.mxu0 0.0
    %1012 = vmatprep.subr.mxu0 0.0
    %1013 = vmatpush1.xpose.msra.mxu0 0.0
    %1014 = vmatprep.subr.mxu0 0.0
    %1015 = vmatpush1.xpose.msra.mxu0 0.0
    %1016 = vmatprep.subr.mxu0 0.0
    %1017 = vmatpush1.xpose.msra.mxu0 0.0
    %1018 = vmatprep.subr.mxu0 0.0
    %1019 = vmatpush1.xpose.msra.mxu0 0.0
    %1020 = vmatprep.subr.mxu0 0.0
    %1021 = vmatpush1.xpose.msra.mxu0 0.0
    %1022 = vmatprep.subr.mxu0 0.0
    %1023 = vmatpush1.xpose.msra.mxu0 0.0
    %1024 = vmatprep.subr.mxu0 0.0
    %1025 = vmatpush1.xpose.msra.mxu0 0.0
    %1026 = vmatprep.subr.mxu0 0.0
    %1027 = vmatpush1.xpose.msra.mxu0 0.0
    %1028 = vmatprep.subr.mxu0 0.0
    %1029 = vmatpush1.xpose.msra.mxu0 0.0
    %1030 = vmatprep.subr.mxu0 0.0
    %1031 = vmatpush1.xpose.msra.mxu0 0.0
    %1032 = vmatprep.subr.mxu0 0.0
    %1033 = vmatpush1.xpose.msra.mxu0 0.0
    %1034 = vmatprep.subr.mxu0 0.0
    %1035 = vmatpush1.xpose.msra.mxu0 0.0
    %1036 = vmatprep.subr.mxu0 0.0
    %1037 = vmatpush1.xpose.msra.mxu0 0.0
    %1038 = vmatprep.subr.mxu0 0.0
    %1039 = vmatpush1.xpose.msra.mxu0 0.0
    %1040 = vmatprep.subr.mxu0 0.0
    %1041 = vmatpush1.xpose.msra.mxu0 0.0
    %1042 = vmatprep.subr.mxu0 0.0
    %1043 = vmatpush1.xpose.msra.mxu0 0.0
    %1044 = vmatprep.subr.mxu0 0.0
    %1045 = vmatpush1.xpose.msra.mxu0 0.0
    %1046 = vmatprep.subr.mxu0 0.0
    %1047 = vmatpush1.xpose.msra.mxu0 0.0
    %1048 = vmatprep.subr.mxu0 0.0
    %1049 = vmatpush1.xpose.msra.mxu0 0.0
    %1050 = vmatprep.subr.mxu0 0.0
    %1051 = vmatpush1.xpose.msra.mxu0 0.0
    %1052 = vmatprep.subr.mxu0 0.0
    %1053 = vmatpush1.xpose.msra.mxu0 0.0
    %1054 = vmatprep.subr.mxu0 0.0
    %1055 = vmatpush1.xpose.msra.mxu0 0.0
    %1056 = vmatprep.mubr.f32.mxu0 0.0
    %1057 = vmatmul.mubr.f32.gmra.mrb[0].mxu0 %v988
    %v1058 = vpop.f32.mrb[0].mxu0
    %v1059 = vadd.f32 0.0, %v1058
    %v1060 = vpop.f32.mrb[0].mxu0
    %1061 = vdwg.mxu0
    %v1062 = vsel %vm132, %v1059, -inf
    %v1063 = vsel %vm212, %v1062, -inf
    %1064 = vmax.xlane.f32.xlu0 %v1063
    %v1065 = vpop.xlane.xlu0 %1064
    %v1066 = vsub.f32 %v1062, %v1065
    %v1067 = vmul.f32 %v1066, 1.442695
    %v1068 = vpow.pop %v1067
    %v1069 = vsel %vm212, %v1068, 0.0
    %1070 = vadd.xlane.f32.xlu0 %v1069
    %v1071 = vpop.xlane.xlu0 %1070
    %1072 = vrot.lane.b32.xlu0 %v125, 92
    %v1073 = vpop.permute.xlu0 %1072
    %v1076 = vsel %vm212, %v1068, 0
    %1078 = vmatprep.subr.mxu0 0.0
    %1079 = vmatpush1.msra.mxu0 %v1073
    %1080 = vmatprep.subr.mxu0 0.0
    %1081 = vmatpush1.msra.mxu0 0.0
    %1082 = vmatprep.subr.mxu0 0.0
    %1083 = vmatpush1.msra.mxu0 0.0
    %1084 = vmatprep.subr.mxu0 0.0
    %1085 = vmatpush1.msra.mxu0 0.0
    %1086 = vmatprep.subr.mxu0 0.0
    %1087 = vmatpush1.msra.mxu0 0.0
    %1088 = vmatprep.subr.mxu0 0.0
    %1089 = vmatpush1.msra.mxu0 0.0
    %1090 = vmatprep.subr.mxu0 0.0
    %1091 = vmatpush1.msra.mxu0 0.0
    %1092 = vmatprep.subr.mxu0 0.0
    %1093 = vmatpush1.msra.mxu0 0.0
    %1094 = vmatprep.subr.mxu0 0.0
    %1095 = vmatpush1.msra.mxu0 0.0
    %1096 = vmatprep.subr.mxu0 0.0
    %1097 = vmatpush1.msra.mxu0 0.0
    %1098 = vmatprep.subr.mxu0 0.0
    %1099 = vmatpush1.msra.mxu0 0.0
    %1100 = vmatprep.subr.mxu0 0.0
    %1101 = vmatpush1.msra.mxu0 0.0
    %1102 = vmatprep.subr.mxu0 0.0
    %1103 = vmatpush1.msra.mxu0 0.0
    %1104 = vmatprep.subr.mxu0 0.0
    %1105 = vmatpush1.msra.mxu0 0.0
    %1106 = vmatprep.subr.mxu0 0.0
    %1107 = vmatpush1.msra.mxu0 0.0
    %1108 = vmatprep.subr.mxu0 0.0
    %1109 = vmatpush1.msra.mxu0 0.0
    %1110 = vmatprep.subr.mxu0 0.0
    %1111 = vmatpush1.msra.mxu0 0.0
    %1112 = vmatprep.subr.mxu0 0.0
    %1113 = vmatpush1.msra.mxu0 0.0
    %1114 = vmatprep.subr.mxu0 0.0
    %1115 = vmatpush1.msra.mxu0 0.0
    %1116 = vmatprep.subr.mxu0 0.0
    %1117 = vmatpush1.msra.mxu0 0.0
    %1118 = vmatprep.subr.mxu0 0.0
    %1119 = vmatpush1.msra.mxu0 0.0
    %1120 = vmatprep.subr.mxu0 0.0
    %1121 = vmatpush1.msra.mxu0 0.0
    %1122 = vmatprep.subr.mxu0 0.0
    %1123 = vmatpush1.msra.mxu0 0.0
    %1124 = vmatprep.subr.mxu0 0.0
    %1125 = vmatpush1.msra.mxu0 0.0
    %1126 = vmatprep.subr.mxu0 0.0
    %1127 = vmatpush1.msra.mxu0 0.0
    %1128 = vmatprep.subr.mxu0 0.0
    %1129 = vmatpush1.msra.mxu0 0.0
    %1130 = vmatprep.subr.mxu0 0.0
    %1131 = vmatpush1.msra.mxu0 0.0
    %1132 = vmatprep.subr.mxu0 0.0
    %1133 = vmatpush1.msra.mxu0 0.0
    %1134 = vmatprep.subr.mxu0 0.0
    %1135 = vmatpush1.msra.mxu0 0.0
    %1136 = vmatprep.subr.mxu0 0.0
    %1137 = vmatpush1.msra.mxu0 0.0
    %1138 = vmatprep.subr.mxu0 0.0
    %1139 = vmatpush1.msra.mxu0 0.0
    %1140 = vmatprep.subr.mxu0 0.0
    %1141 = vmatpush1.msra.mxu0 0.0
    %1142 = vmatprep.mubr.f32.mxu0 0.0
    %1143 = vmatmul.mubr.f32.gmra.mrb[0].mxu0 %v1076
    %v1144 = vpop.f32.mrb[0].mxu0
    %v1145 = vadd.f32 0.0, %v1144
    %v1146 = vpop.f32.mrb[0].mxu0
    %1147 = vdwg.mxu0
    %v1148 = vrcp.pop %v1071
    %v1149 = vmul.f32 1.0, %v1148
    %v1150 = vmul.f32 %v1145, %v1149
    %1151 = vrot.lane.b32.xlu0 %v125, 120
    %v1152 = vpop.permute.xlu0 %1151
    %1153 = vrot.lane.b32.xlu0 %v125, 104
    %v1154 = vpop.permute.xlu0 %1153
    %v1155 = vsel %vm136, %v1152, 0
    %v1157 = vsel %vm136, %v1154, 0
    %1159 = vmatprep.subr.mxu0 0.0
    %1160 = vmatpush1.xpose.msra.mxu0 %v1157
    %1161 = vmatprep.subr.mxu0 0.0
    %1162 = vmatpush1.xpose.msra.mxu0 0.0
    %1163 = vmatprep.subr.mxu0 0.0
    %1164 = vmatpush1.xpose.msra.mxu0 0.0
    %1165 = vmatprep.subr.mxu0 0.0
    %1166 = vmatpush1.xpose.msra.mxu0 0.0
    %1167 = vmatprep.subr.mxu0 0.0
    %1168 = vmatpush1.xpose.msra.mxu0 0.0
    %1169 = vmatprep.subr.mxu0 0.0
    %1170 = vmatpush1.xpose.msra.mxu0 0.0
    %1171 = vmatprep.subr.mxu0 0.0
    %1172 = vmatpush1.xpose.msra.mxu0 0.0
    %1173 = vmatprep.subr.mxu0 0.0
    %1174 = vmatpush1.xpose.msra.mxu0 0.0
    %1175 = vmatprep.subr.mxu0 0.0
    %1176 = vmatpush1.xpose.msra.mxu0 0.0
    %1177 = vmatprep.subr.mxu0 0.0
    %1178 = vmatpush1.xpose.msra.mxu0 0.0
    %1179 = vmatprep.subr.mxu0 0.0
    %1180 = vmatpush1.xpose.msra.mxu0 0.0
    %1181 = vmatprep.subr.mxu0 0.0
    %1182 = vmatpush1.xpose.msra.mxu0 0.0
    %1183 = vmatprep.subr.mxu0 0.0
    %1184 = vmatpush1.xpose.msra.mxu0 0.0
    %1185 = vmatprep.subr.mxu0 0.0
    %1186 = vmatpush1.xpose.msra.mxu0 0.0
    %1187 = vmatprep.subr.mxu0 0.0
    %1188 = vmatpush1.xpose.msra.mxu0 0.0
    %1189 = vmatprep.subr.mxu0 0.0
    %1190 = vmatpush1.xpose.msra.mxu0 0.0
    %1191 = vmatprep.subr.mxu0 0.0
    %1192 = vmatpush1.xpose.msra.mxu0 0.0
    %1193 = vmatprep.subr.mxu0 0.0
    %1194 = vmatpush1.xpose.msra.mxu0 0.0
    %1195 = vmatprep.subr.mxu0 0.0
    %1196 = vmatpush1.xpose.msra.mxu0 0.0
    %1197 = vmatprep.subr.mxu0 0.0
    %1198 = vmatpush1.xpose.msra.mxu0 0.0
    %1199 = vmatprep.subr.mxu0 0.0
    %1200 = vmatpush1.xpose.msra.mxu0 0.0
    %1201 = vmatprep.subr.mxu0 0.0
    %1202 = vmatpush1.xpose.msra.mxu0 0.0
    %1203 = vmatprep.subr.mxu0 0.0
    %1204 = vmatpush1.xpose.msra.mxu0 0.0
    %1205 = vmatprep.subr.mxu0 0.0
    %1206 = vmatpush1.xpose.msra.mxu0 0.0
    %1207 = vmatprep.subr.mxu0 0.0
    %1208 = vmatpush1.xpose.msra.mxu0 0.0
    %1209 = vmatprep.subr.mxu0 0.0
    %1210 = vmatpush1.xpose.msra.mxu0 0.0
    %1211 = vmatprep.subr.mxu0 0.0
    %1212 = vmatpush1.xpose.msra.mxu0 0.0
    %1213 = vmatprep.subr.mxu0 0.0
    %1214 = vmatpush1.xpose.msra.mxu0 0.0
    %1215 = vmatprep.subr.mxu0 0.0
    %1216 = vmatpush1.xpose.msra.mxu0 0.0
    %1217 = vmatprep.subr.mxu0 0.0
    %1218 = vmatpush1.xpose.msra.mxu0 0.0
    %1219 = vmatprep.subr.mxu0 0.0
    %1220 = vmatpush1.xpose.msra.mxu0 0.0
    %1221 = vmatprep.subr.mxu0 0.0
    %1222 = vmatpush1.xpose.msra.mxu0 0.0
    %1223 = vmatprep.mubr.f32.mxu0 0.0
    %1224 = vmatmul.mubr.f32.gmra.mrb[0].mxu0 %v1155
    %v1225 = vpop.f32.mrb[0].mxu0
    %v1226 = vadd.f32 0.0, %v1225
    %v1227 = vpop.f32.mrb[0].mxu0
    %1228 = vdwg.mxu0
    %v1229 = vsel %vm132, %v1226, -inf
    %v1230 = vsel %vm212, %v1229, -inf
    %1231 = vmax.xlane.f32.xlu0 %v1230
    %v1232 = vpop.xlane.xlu0 %1231
    %v1233 = vsub.f32 %v1229, %v1232
    %v1234 = vmul.f32 %v1233, 1.442695
    %v1235 = vpow.pop %v1234
    %v1236 = vsel %vm212, %v1235, 0.0
    %1237 = vadd.xlane.f32.xlu0 %v1236
    %v1238 = vpop.xlane.xlu0 %1237
    %1239 = vrot.lane.b32.xlu0 %v125, 88
    %v1240 = vpop.permute.xlu0 %1239
    %v1243 = vsel %vm212, %v1235, 0
    %1245 = vmatprep.subr.mxu0 0.0
    %1246 = vmatpush1.msra.mxu0 %v1240
    %1247 = vmatprep.subr.mxu0 0.0
    %1248 = vmatpush1.msra.mxu0 0.0
    %1249 = vmatprep.subr.mxu0 0.0
    %1250 = vmatpush1.msra.mxu0 0.0
    %1251 = vmatprep.subr.mxu0 0.0
    %1252 = vmatpush1.msra.mxu0 0.0
    %1253 = vmatprep.subr.mxu0 0.0
    %1254 = vmatpush1.msra.mxu0 0.0
    %1255 = vmatprep.subr.mxu0 0.0
    %1256 = vmatpush1.msra.mxu0 0.0
    %1257 = vmatprep.subr.mxu0 0.0
    %1258 = vmatpush1.msra.mxu0 0.0
    %1259 = vmatprep.subr.mxu0 0.0
    %1260 = vmatpush1.msra.mxu0 0.0
    %1261 = vmatprep.subr.mxu0 0.0
    %1262 = vmatpush1.msra.mxu0 0.0
    %1263 = vmatprep.subr.mxu0 0.0
    %1264 = vmatpush1.msra.mxu0 0.0
    %1265 = vmatprep.subr.mxu0 0.0
    %1266 = vmatpush1.msra.mxu0 0.0
    %1267 = vmatprep.subr.mxu0 0.0
    %1268 = vmatpush1.msra.mxu0 0.0
    %1269 = vmatprep.subr.mxu0 0.0
    %1270 = vmatpush1.msra.mxu0 0.0
    %1271 = vmatprep.subr.mxu0 0.0
    %1272 = vmatpush1.msra.mxu0 0.0
    %1273 = vmatprep.subr.mxu0 0.0
    %1274 = vmatpush1.msra.mxu0 0.0
    %1275 = vmatprep.subr.mxu0 0.0
    %1276 = vmatpush1.msra.mxu0 0.0
    %1277 = vmatprep.subr.mxu0 0.0
    %1278 = vmatpush1.msra.mxu0 0.0
    %1279 = vmatprep.subr.mxu0 0.0
    %1280 = vmatpush1.msra.mxu0 0.0
    %1281 = vmatprep.subr.mxu0 0.0
    %1282 = vmatpush1.msra.mxu0 0.0
    %1283 = vmatprep.subr.mxu0 0.0
    %1284 = vmatpush1.msra.mxu0 0.0
    %1285 = vmatprep.subr.mxu0 0.0
    %1286 = vmatpush1.msra.mxu0 0.0
    %1287 = vmatprep.subr.mxu0 0.0
    %1288 = vmatpush1.msra.mxu0 0.0
    %1289 = vmatprep.subr.mxu0 0.0
    %1290 = vmatpush1.msra.mxu0 0.0
    %1291 = vmatprep.subr.mxu0 0.0
    %1292 = vmatpush1.msra.mxu0 0.0
    %1293 = vmatprep.subr.mxu0 0.0
    %1294 = vmatpush1.msra.mxu0 0.0
    %1295 = vmatprep.subr.mxu0 0.0
    %1296 = vmatpush1.msra.mxu0 0.0
    %1297 = vmatprep.subr.mxu0 0.0
    %1298 = vmatpush1.msra.mxu0 0.0
    %1299 = vmatprep.subr.mxu0 0.0
    %1300 = vmatpush1.msra.mxu0 0.0
    %1301 = vmatprep.subr.mxu0 0.0
    %1302 = vmatpush1.msra.mxu0 0.0
    %1303 = vmatprep.subr.mxu0 0.0
    %1304 = vmatpush1.msra.mxu0 0.0
    %1305 = vmatprep.subr.mxu0 0.0
    %1306 = vmatpush1.msra.mxu0 0.0
    %1307 = vmatprep.subr.mxu0 0.0
    %1308 = vmatpush1.msra.mxu0 0.0
    %1309 = vmatprep.mubr.f32.mxu0 0.0
    %1310 = vmatmul.mubr.f32.gmra.mrb[0].mxu0 %v1243
    %v1311 = vpop.f32.mrb[0].mxu0
    %v1312 = vadd.f32 0.0, %v1311
    %v1313 = vpop.f32.mrb[0].mxu0
    %1314 = vdwg.mxu0
    %v1315 = vrcp.pop %v1238
    %v1316 = vmul.f32 1.0, %v1315
    %v1317 = vmul.f32 %v1312, %v1316
    %1318 = vrot.lane.b32.xlu0 %v125, 116
    %v1319 = vpop.permute.xlu0 %1318
    %1320 = vrot.lane.b32.xlu0 %v125, 100
    %v1321 = vpop.permute.xlu0 %1320
    %v1322 = vsel %vm136, %v1319, 0
    %v1324 = vsel %vm136, %v1321, 0
    %1326 = vmatprep.subr.mxu0 0.0
    %1327 = vmatpush1.xpose.msra.mxu0 %v1324
    %1328 = vmatprep.subr.mxu0 0.0
    %1329 = vmatpush1.xpose.msra.mxu0 0.0
    %1330 = vmatprep.subr.mxu0 0.0
    %1331 = vmatpush1.xpose.msra.mxu0 0.0
    %1332 = vmatprep.subr.mxu0 0.0
    %1333 = vmatpush1.xpose.msra.mxu0 0.0
    %1334 = vmatprep.subr.mxu0 0.0
    %1335 = vmatpush1.xpose.msra.mxu0 0.0
    %1336 = vmatprep.subr.mxu0 0.0
    %1337 = vmatpush1.xpose.msra.mxu0 0.0
    %1338 = vmatprep.subr.mxu0 0.0
    %1339 = vmatpush1.xpose.msra.mxu0 0.0
    %1340 = vmatprep.subr.mxu0 0.0
    %1341 = vmatpush1.xpose.msra.mxu0 0.0
    %1342 = vmatprep.subr.mxu0 0.0
    %1343 = vmatpush1.xpose.msra.mxu0 0.0
    %1344 = vmatprep.subr.mxu0 0.0
    %1345 = vmatpush1.xpose.msra.mxu0 0.0
    %1346 = vmatprep.subr.mxu0 0.0
    %1347 = vmatpush1.xpose.msra.mxu0 0.0
    %1348 = vmatprep.subr.mxu0 0.0
    %1349 = vmatpush1.xpose.msra.mxu0 0.0
    %1350 = vmatprep.subr.mxu0 0.0
    %1351 = vmatpush1.xpose.msra.mxu0 0.0
    %1352 = vmatprep.subr.mxu0 0.0
    %1353 = vmatpush1.xpose.msra.mxu0 0.0
    %1354 = vmatprep.subr.mxu0 0.0
    %1355 = vmatpush1.xpose.msra.mxu0 0.0
    %1356 = vmatprep.subr.mxu0 0.0
    %1357 = vmatpush1.xpose.msra.mxu0 0.0
    %1358 = vmatprep.subr.mxu0 0.0
    %1359 = vmatpush1.xpose.msra.mxu0 0.0
    %1360 = vmatprep.subr.mxu0 0.0
    %1361 = vmatpush1.xpose.msra.mxu0 0.0
    %1362 = vmatprep.subr.mxu0 0.0
    %1363 = vmatpush1.xpose.msra.mxu0 0.0
    %1364 = vmatprep.subr.mxu0 0.0
    %1365 = vmatpush1.xpose.msra.mxu0 0.0
    %1366 = vmatprep.subr.mxu0 0.0
    %1367 = vmatpush1.xpose.msra.mxu0 0.0
    %1368 = vmatprep.subr.mxu0 0.0
    %1369 = vmatpush1.xpose.msra.mxu0 0.0
    %1370 = vmatprep.subr.mxu0 0.0
    %1371 = vmatpush1.xpose.msra.mxu0 0.0
    %1372 = vmatprep.subr.mxu0 0.0
    %1373 = vmatpush1.xpose.msra.mxu0 0.0
    %1374 = vmatprep.subr.mxu0 0.0
    %1375 = vmatpush1.xpose.msra.mxu0 0.0
    %1376 = vmatprep.subr.mxu0 0.0
    %1377 = vmatpush1.xpose.msra.mxu0 0.0
    %1378 = vmatprep.subr.mxu0 0.0
    %1379 = vmatpush1.xpose.msra.mxu0 0.0
    %1380 = vmatprep.subr.mxu0 0.0
    %1381 = vmatpush1.xpose.msra.mxu0 0.0
    %1382 = vmatprep.subr.mxu0 0.0
    %1383 = vmatpush1.xpose.msra.mxu0 0.0
    %1384 = vmatprep.subr.mxu0 0.0
    %1385 = vmatpush1.xpose.msra.mxu0 0.0
    %1386 = vmatprep.subr.mxu0 0.0
    %1387 = vmatpush1.xpose.msra.mxu0 0.0
    %1388 = vmatprep.subr.mxu0 0.0
    %1389 = vmatpush1.xpose.msra.mxu0 0.0
    %1390 = vmatprep.mubr.f32.mxu0 0.0
    %1391 = vmatmul.mubr.f32.gmra.mrb[0].mxu0 %v1322
    %v1392 = vpop.f32.mrb[0].mxu0
    %v1393 = vadd.f32 0.0, %v1392
    %v1394 = vpop.f32.mrb[0].mxu0
    %1395 = vdwg.mxu0
    %v1396 = vsel %vm132, %v1393, -inf
    %v1397 = vsel %vm212, %v1396, -inf
    %1398 = vmax.xlane.f32.xlu0 %v1397
    %v1399 = vpop.xlane.xlu0 %1398
    %v1400 = vsub.f32 %v1396, %v1399
    %v1401 = vmul.f32 %v1400, 1.442695
    %v1402 = vpow.pop %v1401
    %v1403 = vsel %vm212, %v1402, 0.0
    %1404 = vadd.xlane.f32.xlu0 %v1403
    %v1405 = vpop.xlane.xlu0 %1404
    %1406 = vrot.lane.b32.xlu0 %v125, 84
    %v1407 = vpop.permute.xlu0 %1406
    %v1410 = vsel %vm212, %v1402, 0
    %1412 = vmatprep.subr.mxu0 0.0
    %1413 = vmatpush1.msra.mxu0 %v1407
    %1414 = vmatprep.subr.mxu0 0.0
    %1415 = vmatpush1.msra.mxu0 0.0
    %1416 = vmatprep.subr.mxu0 0.0
    %1417 = vmatpush1.msra.mxu0 0.0
    %1418 = vmatprep.subr.mxu0 0.0
    %1419 = vmatpush1.msra.mxu0 0.0
    %1420 = vmatprep.subr.mxu0 0.0
    %1421 = vmatpush1.msra.mxu0 0.0
    %1422 = vmatprep.subr.mxu0 0.0
    %1423 = vmatpush1.msra.mxu0 0.0
    %1424 = vmatprep.subr.mxu0 0.0
    %1425 = vmatpush1.msra.mxu0 0.0
    %1426 = vmatprep.subr.mxu0 0.0
    %1427 = vmatpush1.msra.mxu0 0.0
    %1428 = vmatprep.subr.mxu0 0.0
    %1429 = vmatpush1.msra.mxu0 0.0
    %1430 = vmatprep.subr.mxu0 0.0
    %1431 = vmatpush1.msra.mxu0 0.0
    %1432 = vmatprep.subr.mxu0 0.0
    %1433 = vmatpush1.msra.mxu0 0.0
    %1434 = vmatprep.subr.mxu0 0.0
    %1435 = vmatpush1.msra.mxu0 0.0
    %1436 = vmatprep.subr.mxu0 0.0
    %1437 = vmatpush1.msra.mxu0 0.0
    %1438 = vmatprep.subr.mxu0 0.0
    %1439 = vmatpush1.msra.mxu0 0.0
    %1440 = vmatprep.subr.mxu0 0.0
    %1441 = vmatpush1.msra.mxu0 0.0
    %1442 = vmatprep.subr.mxu0 0.0
    %1443 = vmatpush1.msra.mxu0 0.0
    %1444 = vmatprep.subr.mxu0 0.0
    %1445 = vmatpush1.msra.mxu0 0.0
    %1446 = vmatprep.subr.mxu0 0.0
    %1447 = vmatpush1.msra.mxu0 0.0
    %1448 = vmatprep.subr.mxu0 0.0
    %1449 = vmatpush1.msra.mxu0 0.0
    %1450 = vmatprep.subr.mxu0 0.0
    %1451 = vmatpush1.msra.mxu0 0.0
    %1452 = vmatprep.subr.mxu0 0.0
    %1453 = vmatpush1.msra.mxu0 0.0
    %1454 = vmatprep.subr.mxu0 0.0
    %1455 = vmatpush1.msra.mxu0 0.0
    %1456 = vmatprep.subr.mxu0 0.0
    %1457 = vmatpush1.msra.mxu0 0.0
    %1458 = vmatprep.subr.mxu0 0.0
    %1459 = vmatpush1.msra.mxu0 0.0
    %1460 = vmatprep.subr.mxu0 0.0
    %1461 = vmatpush1.msra.mxu0 0.0
    %1462 = vmatprep.subr.mxu0 0.0
    %1463 = vmatpush1.msra.mxu0 0.0
    %1464 = vmatprep.subr.mxu0 0.0
    %1465 = vmatpush1.msra.mxu0 0.0
    %1466 = vmatprep.subr.mxu0 0.0
    %1467 = vmatpush1.msra.mxu0 0.0
    %1468 = vmatprep.subr.mxu0 0.0
    %1469 = vmatpush1.msra.mxu0 0.0
    %1470 = vmatprep.subr.mxu0 0.0
    %1471 = vmatpush1.msra.mxu0 0.0
    %1472 = vmatprep.subr.mxu0 0.0
    %1473 = vmatpush1.msra.mxu0 0.0
    %1474 = vmatprep.subr.mxu0 0.0
    %1475 = vmatpush1.msra.mxu0 0.0
    %1476 = vmatprep.mubr.f32.mxu0 0.0
    %1477 = vmatmul.mubr.f32.gmra.mrb[0].mxu0 %v1410
    %v1478 = vpop.f32.mrb[0].mxu0
    %v1479 = vadd.f32 0.0, %v1478
    %v1480 = vpop.f32.mrb[0].mxu0
    %1481 = vdwg.mxu0
    %v1482 = vrcp.pop %v1405
    %v1483 = vmul.f32 1.0, %v1482
    %v1484 = vmul.f32 %v1479, %v1483
    %1486 = vrot.lane.b32.xlu0 %v1150, 4
    %v1487 = vpop.permute.xlu0 %1486
    %1490 = vrot.lane.b32.xlu0 %v1317, 8
    %v1491 = vpop.permute.xlu0 %1490
    %1494 = vrot.lane.b32.xlu0 %v1484, 12
    %v1495 = vpop.permute.xlu0 %1494
    %v1497 = vsel %vm136, %v983, %v1487
    %v1498 = vsel %vm212, %v1497, %v1491
    %v1499 = vsel %vm816, %v1498, %v1495
    %v1500 = vmul.f32 %v817, 10000.0
    %v1501 = vmul.f32 %v1499, 10000.0
    %v1502 = vround.ne.pseudo %v1500
    %v1503 = vround.ne.pseudo %v1501
    %v1504 = vmul.f32 %v1502, 0.0001
    %v1505 = vmul.f32 %v1503, 0.0001
    %v1506 = vmul.f32 %v1504, 10000.0
    %v1507 = vmul.f32 %v1505, 10000.0
    %v1508 = vround.ne.pseudo %v1506
    %v1509 = vround.ne.pseudo %v1507
    %v1510 = vmul.f32 %v1508, 0.0001
    %v1511 = vmul.f32 %v1509, 0.0001
    %vm1512 = vcmask 130048
    %1513 = vst.msk [vmem:[#allocation7] sm:$0xff] %vm1512, %v1510
    %1514 = vst.msk [vmem:[#allocation7 + $0x8] sm:$0xff] %vm1512, %v1511
    // Predicated region
    $region18: #{tpu_custom_call.1} parent=1 // pred_check
      _
    $region19: #{tpu_custom_call.1} parent=1 // pred_check_branch
      %1516 = sbr.rel (0) target = $region21
    $region20: #{tpu_custom_call.1} parent=1 // pred_region
      %s1518 = ssub.s32 256, 256
      %1519 = vsyncadd [#allocation4], %s1518
      %s1520 = sshll.u32 [#allocation7], 4
      %s1521 = int_to_ptr.vmem [resolvable:$true] %s1520
      %1526 = dma.vmem_to_hbm [thread:$0]  %s1521, 256, %s2, [#allocation4], 128, 128, 8
    $region21: #{tpu_custom_call.1} parent=1 // pred_fallthru
      _
    // Predicated region
    $region22: #{tpu_custom_call.1} parent=1 // pred_check
      _
    $region23: #{tpu_custom_call.1} parent=1 // pred_check_branch
      %1528 = sbr.rel (0) target = $region25
    $region24: #{tpu_custom_call.1} parent=1 // pred_region
      %1529 = dma.done [#allocation4], 256
    $region25: #{tpu_custom_call.1} parent=1 // pred_fallthru
      _
    %1530 = vsyncpa [#allocation3], 1
    %1531 = vsyncpa [#allocation6], 1
    %1532 = vsyncpa [#allocation4], 1

</llo_original>
